<compile_context>
chip_gen: v7x
topology: tpu7x:2x2x1
jax: 0.10.0
libtpu: 0.0.40
codegen_flags: <defaults>
</compile_context>

<pallas_src>
import jax
import jax.numpy as jnp
from jax.experimental import pallas as pl
from jax.experimental.pallas import tpu as pltpu

NEG_FILL = -10000000000.0  # matches torch masked_fill value


def massa_kernel(lens_ref, emb_ref, w_ref, b_ref, out_ref):
    # One grid step = TP proteins.
    #   lens_ref: (N,)          int32, SMEM (scalar-prefetched lengths)
    #   emb_ref:  (TP, L, D_in) bf16   embedded sequence tokens
    #   w_ref:    (D_in, D)     bf16   stand-in encoder projection weight (resident)
    #   b_ref:    (1, D)        f32    projection bias
    #   out_ref:  (TP, L, D)    f32
    i = pl.program_id(0)
    TP, L, D_in = emb_ref.shape
    D = out_ref.shape[-1]

    # Stand-in encoder projection: one big MXU matmul over the merged rows,
    # bf16 operands, f32 accumulate.
    x = emb_ref[...].reshape(TP * L, D_in)
    h = jnp.dot(x, w_ref[...], preferred_element_type=jnp.float32)
    h = h + b_ref[...]                                   # (TP*L, D) f32
    h3 = h.reshape(TP, L, D)

    # L2 norm over hidden dim -> (TP, L): L lands on the lane axis, so the
    # softmax reductions below are dense lane reductions.
    norm = jnp.sqrt(jnp.sum(h3 * h3, axis=-1))           # (TP, L)

    # Build the padding mask in-kernel from the scalar lengths (no mask DMA).
    pos = jax.lax.broadcasted_iota(jnp.int32, (TP, L), 1)
    row = jax.lax.broadcasted_iota(jnp.int32, (TP, L), 0)
    lens_bcast = jnp.zeros((TP, L), jnp.int32)
    for p in range(TP):                                  # TP is static & small
        ln = lens_ref[i * TP + p]
        lens_bcast = jnp.where(row == p, ln, lens_bcast)
    valid = pos < lens_bcast                             # (TP, L) bool

    # masked_fill + softmax over the sequence length (torch dim=1).
    norm = jnp.where(valid, norm, NEG_FILL)
    mx = jnp.max(norm, axis=-1, keepdims=True)           # (TP, 1)
    e = jnp.exp(norm - mx)
    denom = jnp.sum(e, axis=-1, keepdims=True)           # (TP, 1)
    sm = e * pl.reciprocal(denom, approx=True)           # (TP, L)

    # pro_feat * norm.unsqueeze(-1)
    out_ref[...] = h3 * sm[..., None]


def massa_forward(emb, w, b, proteins_num, *, tp=4):
    """emb: (N, L, D_in) f32, w: (D_in, D) f32, b: (1, D) f32,
    proteins_num: (N,) int32 valid sequence lengths."""
    N, L, D_in = emb.shape
    D = w.shape[1]
    assert N % tp == 0, "N must be a multiple of the proteins-per-block tile"
    return pl.pallas_call(
        massa_kernel,
        out_shape=jax.ShapeDtypeStruct((N, L, D), jnp.float32),
        grid_spec=pltpu.PrefetchScalarGridSpec(
            num_scalar_prefetch=1,
            grid=(N // tp,),
            in_specs=[
                pl.BlockSpec((tp, L, D_in), lambda i, lens: (i, 0, 0)),
                pl.BlockSpec((D_in, D), lambda i, lens: (0, 0)),
                pl.BlockSpec((1, D), lambda i, lens: (0, 0)),
            ],
            out_specs=pl.BlockSpec((tp, L, D), lambda i, lens: (i, 0, 0)),
        ),
        compiler_params=pltpu.CompilerParams(
            dimension_semantics=("parallel",),
            # Plenty of headroom at these tiles; raise for ESM-scale L/D and
            # shrink `tp` on v7x (64 MiB physical VMEM vs 128 MiB on v5e/v6e).
            vmem_limit_bytes=32 * 1024 * 1024,
        ),
    )(proteins_num, emb.astype(jnp.bfloat16), w.astype(jnp.bfloat16), b)


if __name__ == "__main__":
    # Small but TPU-friendly shapes: lane-dense D/D_in (128), TP*L = 512 rows,
    # grid of 2 steps (feeds both v7x TensorCores).
    N, L, D_in, D, VOCAB, TP = 8, 128, 128, 128, 25, 4

    key = jax.random.PRNGKey(0)
    k_tok, k_emb, k_w = jax.random.split(key, 3)

    # protein_data = (pro_ids, seq_feat, proteins_num)
    pro_ids = jnp.arange(N, dtype=jnp.int32)
    seq_feat = jax.random.randint(k_tok, (N, L), 0, VOCAB, dtype=jnp.int32)
    proteins_num = jnp.array([128, 100, 77, 64, 50, 33, 16, 8], dtype=jnp.int32)

    # Deterministic stand-in encoder params.
    embed_table = jax.random.normal(k_emb, (VOCAB, D_in), dtype=jnp.float32) * 0.1
    w = jax.random.normal(k_w, (D_in, D), dtype=jnp.float32) * (1.0 / jnp.sqrt(D_in))
    b = jnp.zeros((1, D), dtype=jnp.float32)

    # Glue (plain JAX): embedding gather stand-in for the ESM tokenization.
    emb = embed_table[seq_feat]                          # (N, L, D_in) f32

    out = massa_forward(emb, w, b, proteins_num, tp=TP)
    out = jax.block_until_ready(out)

    # Pure-JAX reference (same bf16 matmul operands, f32 accumulate / math).
    emb_bf = emb.astype(jnp.bfloat16).astype(jnp.float32)
    w_bf = w.astype(jnp.bfloat16).astype(jnp.float32)
    h_ref = jnp.einsum("nld,de->nle", emb_bf, w_bf) + b[0]
    norm_ref = jnp.linalg.norm(h_ref, axis=2)
    mask_ref = jnp.arange(L)[None, :] < proteins_num[:, None]
    norm_ref = jnp.where(mask_ref, norm_ref, NEG_FILL)
    sm_ref = jax.nn.softmax(norm_ref, axis=1)
    ref = h_ref * sm_ref[..., None]

    assert out.shape == (N, L, D)
    max_err = jnp.max(jnp.abs(out - ref))
    assert jnp.allclose(out, ref, atol=1e-4, rtol=2e-2), (
        f"mismatch vs reference (max abs err {max_err})")
    print("KERNEL_OK")
</pallas_src>

<mosaic_0001>
module attributes {stable_mosaic.version = 11 : i64} {
  func.func @massa_kernel(%arg0: i32, %arg1: memref<8xi32, #tpu.memory_space<smem>>, %arg2: memref<4x128x128xbf16, #tpu.memory_space<vmem>>, %arg3: memref<128x128xbf16, #tpu.memory_space<vmem>>, %arg4: memref<1x128xf32, #tpu.memory_space<vmem>>, %arg5: memref<4x128x128xf32, #tpu.memory_space<vmem>>) attributes {dimension_semantics = [#tpu.dimension_semantics<parallel>], iteration_bounds = array<i64: 2>, scalar_prefetch = 1 : i64, scratch_operands = 0 : i64, tpu.core_type = #tpu.core_type<tc>, window_params = [{transform_indices = @transform_0, window_bounds = array<i64: 4, 128, 128>}, {pipeline_mode = #tpu.pipeline_mode<synchronous>, transform_indices = @transform_1, window_bounds = array<i64: 128, 128>}, {pipeline_mode = #tpu.pipeline_mode<synchronous>, transform_indices = @transform_2, window_bounds = array<i64: 1, 128>}, {transform_indices = @transform_3, window_bounds = array<i64: 4, 128, 128>}]} {
    %c0 = arith.constant 0 : index
    %c0_0 = arith.constant 0 : index
    %c0_1 = arith.constant 0 : index
    %0 = vector.load %arg2[%c0, %c0_0, %c0_1] : memref<4x128x128xbf16, #tpu.memory_space<vmem>>, vector<4x128x128xbf16>
    %1 = vector.shape_cast %0 : vector<4x128x128xbf16> to vector<512x128xbf16>
    %c0_2 = arith.constant 0 : index
    %c0_3 = arith.constant 0 : index
    %2 = vector.load %arg3[%c0_2, %c0_3] : memref<128x128xbf16, #tpu.memory_space<vmem>>, vector<128x128xbf16>
    %cst = arith.constant dense<0.000000e+00> : vector<512x128xf32>
    %3 = tpu.matmul %1, %2, %cst {dimension_numbers = #tpu.dot_dimension_numbers<[1], [0], [0], [1], [0, 0, 1, 1], [], []>} : vector<512x128xbf16>, vector<128x128xbf16>, vector<512x128xf32> -> vector<512x128xf32>
    %c0_4 = arith.constant 0 : index
    %c0_5 = arith.constant 0 : index
    %4 = vector.load %arg4[%c0_4, %c0_5] : memref<1x128xf32, #tpu.memory_space<vmem>>, vector<1x128xf32>
    %5 = vector.broadcast %4 : vector<1x128xf32> to vector<512x128xf32>
    %6 = arith.addf %3, %5 : vector<512x128xf32>
    %7 = vector.shape_cast %6 : vector<512x128xf32> to vector<4x128x128xf32>
    %8 = arith.mulf %7, %7 : vector<4x128x128xf32>
    %cst_6 = arith.constant dense<0.000000e+00> : vector<4x128xf32>
    %9 = vector.multi_reduction <add>, %8, %cst_6 [2] : vector<4x128x128xf32> to vector<4x128xf32>
    %10 = math.sqrt %9 : vector<4x128xf32>
    %11 = tpu.iota {dimensions = array<i32: 1>} : vector<4x128xi32>
    %12 = tpu.iota {dimensions = array<i32: 0>} : vector<4x128xi32>
    %c0_i32 = arith.constant 0 : i32
    %13 = vector.broadcast %c0_i32 : i32 to vector<4x128xi32>
    %c4_i32 = arith.constant 4 : i32
    %14 = arith.muli %arg0, %c4_i32 : i32
    %c0_i32_7 = arith.constant 0 : i32
    %15 = arith.addi %14, %c0_i32_7 : i32
    %16 = arith.index_cast %15 : i32 to index
    %17 = memref.load %arg1[%16] : memref<8xi32, #tpu.memory_space<smem>>
    %c0_i32_8 = arith.constant 0 : i32
    %18 = vector.broadcast %c0_i32_8 : i32 to vector<4x128xi32>
    %19 = arith.cmpi eq, %12, %18 : vector<4x128xi32>
    %20 = vector.broadcast %17 : i32 to vector<4x128xi32>
    %21 = arith.select %19, %20, %13 : vector<4x128xi1>, vector<4x128xi32>
    %c4_i32_9 = arith.constant 4 : i32
    %22 = arith.muli %arg0, %c4_i32_9 : i32
    %c1_i32 = arith.constant 1 : i32
    %23 = arith.addi %22, %c1_i32 : i32
    %24 = arith.index_cast %23 : i32 to index
    %25 = memref.load %arg1[%24] : memref<8xi32, #tpu.memory_space<smem>>
    %c1_i32_10 = arith.constant 1 : i32
    %26 = vector.broadcast %c1_i32_10 : i32 to vector<4x128xi32>
    %27 = arith.cmpi eq, %12, %26 : vector<4x128xi32>
    %28 = vector.broadcast %25 : i32 to vector<4x128xi32>
    %29 = arith.select %27, %28, %21 : vector<4x128xi1>, vector<4x128xi32>
    %c4_i32_11 = arith.constant 4 : i32
    %30 = arith.muli %arg0, %c4_i32_11 : i32
    %c2_i32 = arith.constant 2 : i32
    %31 = arith.addi %30, %c2_i32 : i32
    %32 = arith.index_cast %31 : i32 to index
    %33 = memref.load %arg1[%32] : memref<8xi32, #tpu.memory_space<smem>>
    %c2_i32_12 = arith.constant 2 : i32
    %34 = vector.broadcast %c2_i32_12 : i32 to vector<4x128xi32>
    %35 = arith.cmpi eq, %12, %34 : vector<4x128xi32>
    %36 = vector.broadcast %33 : i32 to vector<4x128xi32>
    %37 = arith.select %35, %36, %29 : vector<4x128xi1>, vector<4x128xi32>
    %c4_i32_13 = arith.constant 4 : i32
    %38 = arith.muli %arg0, %c4_i32_13 : i32
    %c3_i32 = arith.constant 3 : i32
    %39 = arith.addi %38, %c3_i32 : i32
    %40 = arith.index_cast %39 : i32 to index
    %41 = memref.load %arg1[%40] : memref<8xi32, #tpu.memory_space<smem>>
    %c3_i32_14 = arith.constant 3 : i32
    %42 = vector.broadcast %c3_i32_14 : i32 to vector<4x128xi32>
    %43 = arith.cmpi eq, %12, %42 : vector<4x128xi32>
    %44 = vector.broadcast %41 : i32 to vector<4x128xi32>
    %45 = arith.select %43, %44, %37 : vector<4x128xi1>, vector<4x128xi32>
    %46 = arith.cmpi slt, %11, %45 : vector<4x128xi32>
    %cst_15 = arith.constant -1.000000e+10 : f32
    %47 = vector.broadcast %cst_15 : f32 to vector<4x128xf32>
    %48 = arith.select %46, %10, %47 : vector<4x128xi1>, vector<4x128xf32>
    %cst_16 = arith.constant dense<0xFF800000> : vector<4xf32>
    %49 = vector.multi_reduction <maximumf>, %48, %cst_16 [1] : vector<4x128xf32> to vector<4xf32>
    %50 = vector.shape_cast %49 : vector<4xf32> to vector<4x1xf32>
    %51 = vector.broadcast %50 : vector<4x1xf32> to vector<4x128xf32>
    %52 = arith.subf %48, %51 : vector<4x128xf32>
    %53 = math.exp %52 : vector<4x128xf32>
    %cst_17 = arith.constant dense<0.000000e+00> : vector<4xf32>
    %54 = vector.multi_reduction <add>, %53, %cst_17 [1] : vector<4x128xf32> to vector<4xf32>
    %55 = vector.shape_cast %54 : vector<4xf32> to vector<4x1xf32>
    %56 = tpu.reciprocal %55 {approx = true} : vector<4x1xf32> -> vector<4x1xf32>
    %57 = vector.broadcast %56 : vector<4x1xf32> to vector<4x128xf32>
    %58 = arith.mulf %53, %57 : vector<4x128xf32>
    %59 = vector.shape_cast %58 : vector<4x128xf32> to vector<4x128x1xf32>
    %60 = vector.broadcast %59 : vector<4x128x1xf32> to vector<4x128x128xf32>
    %61 = arith.mulf %7, %60 : vector<4x128x128xf32>
    %c0_18 = arith.constant 0 : index
    %c0_19 = arith.constant 0 : index
    %c0_20 = arith.constant 0 : index
    %62 = vector.load %arg5[%c0_18, %c0_19, %c0_20] : memref<4x128x128xf32, #tpu.memory_space<vmem>>, vector<4x128x128xf32>
    tpu.vector_store %arg5[%c0_18, %c0_19, %c0_20], %61 {strides = array<i32>} : memref<4x128x128xf32, #tpu.memory_space<vmem>>, vector<4x128x128xf32>,
    return
  }
  func.func @transform_0(%arg0: i32, %arg1: memref<8xi32, #tpu.memory_space<smem>>) -> (i32, i32, i32) {
    %c0_i32 = arith.constant 0 : i32
    %c0_i32_0 = arith.constant 0 : i32
    %c0_i32_1 = arith.constant 0 : i32
    return %arg0, %c0_i32, %c0_i32_0 : i32, i32, i32
  }
  func.func @transform_1(%arg0: i32, %arg1: memref<8xi32, #tpu.memory_space<smem>>) -> (i32, i32) {
    %c0_i32 = arith.constant 0 : i32
    %c0_i32_0 = arith.constant 0 : i32
    %c0_i32_1 = arith.constant 0 : i32
    return %c0_i32, %c0_i32_0 : i32, i32
  }
  func.func @transform_2(%arg0: i32, %arg1: memref<8xi32, #tpu.memory_space<smem>>) -> (i32, i32) {
    %c0_i32 = arith.constant 0 : i32
    %c0_i32_0 = arith.constant 0 : i32
    %c0_i32_1 = arith.constant 0 : i32
    return %c0_i32, %c0_i32_0 : i32, i32
  }
  func.func @transform_3(%arg0: i32, %arg1: memref<8xi32, #tpu.memory_space<smem>>) -> (i32, i32, i32) {
    %c0_i32 = arith.constant 0 : i32
    %c0_i32_0 = arith.constant 0 : i32
    %c0_i32_1 = arith.constant 0 : i32
    return %arg0, %c0_i32, %c0_i32_0 : i32, i32, i32
  }
}

</mosaic_0001>

<llo_original>
// kernel: tpu_custom_call.1
$region0: #{tpu_custom_call.1}
  #allocation0 [shape = 'u32[]', space=smem, size = 0x4, offset = 0x4, fixed_abs, tag = 'smem constant byte address 0x4 - core index']
  #allocation1 [shape = 'u32[144,128]{1,0:T(1,128)}', space=vmem, size = 0x12000, scoped, tag = 'internal scratch']
  #allocation2 [shape = 's32[1]{0}', space=sflag, size = 0x4, scoped, tag = 'scoped memory for tpu_custom_call.1']
  #allocation3 [shape = 'u8[512]{0}', space=smem, size = 0x200, scoped, tag = 'prefetched SMEM operand 0']
  %s0 = inlined_call_operand.hbm [shape: s32[8], index: 0, kind: input, shape index: {}]
  %s1 = inlined_call_operand.hbm [shape: bf16[8,128,128], index: 1, kind: input, shape index: {}]
  %s2 = inlined_call_operand.hbm [shape: bf16[128,128], index: 2, kind: input, shape index: {}]
  %s3 = inlined_call_operand.vmem [shape: f32[1,128], index: 3, kind: input, shape index: {}]
  %s4 = inlined_call_operand.hbm [shape: f32[8,128,128], index: 4, kind: output, shape index: {}]
  %s5 = sld [smem:[#allocation0]]
  $region53: #{tpu_custom_call.1} parent=0
    _
  %s7 = ssub.s32 1, %s5
  %s8 = scalar_select 0, %s7, %s5
  %10 = dma.hbm_to_smem %s0, 16, [#allocation3], [#allocation2]
  %11 = dma.done [#allocation2], 16
  %12 = sfence
  $region1: #{tpu_custom_call.1} parent=0
    #allocation4 [shape = 'u8[262144]{0}', space=vmem, size = 0x40000, scoped, tag = 'input window, operand 1']
    #allocation5 [shape = 's32[2]{0}', space=sflag, size = 0x8, scoped, tag = 'scoped memory for tpu_custom_call.1']
    #allocation6 [shape = 's32[2]{0}', space=sflag, size = 0x8, scoped, tag = 'scoped memory for tpu_custom_call.1']
    #allocation7 [shape = 'u8[32768]{0}', space=vmem, size = 0x8000, scoped, tag = 'input window, operand 2, single buffered']
    #allocation8 [shape = 's32[1]{0}', space=sflag, size = 0x4, scoped, tag = 'scoped memory for tpu_custom_call.1']
    #allocation9 [shape = 'u8[524288]{0}', space=vmem, size = 0x80000, scoped, tag = 'output window, operand 0']
    %13 = vsyncpa [#allocation5], 0
    %s14 = scalar_lea.sflag [#allocation5], 1
    %15 = vsyncpa %s14, 0
    %16 = vsyncpa [#allocation8], 0
    %17 = vsyncpa [#allocation6], 0
    %s18 = scalar_lea.sflag [#allocation6], 1
    %19 = vsyncpa %s18, 0
    loop: start=0, step=1, limit=4
    $region2: #{tpu_custom_call.1} parent=1 // loop_pre_header
      _
    $region3: #{tpu_custom_call.1} parent=1 // loop_header
      %s21 = sphi 0, %s25
      %p22 = scmp.ge.s32.totalorder %s21, 4
      %s31 = sphi 0, %s33
      %s34 = sphi 0, %s31
      %s35 = sphi 0, %s34
      %s51 = sphi 0, %s35
      %s55 = sphi 0, %s55
      %s57 = sphi 0, %s55
      %s58 = sphi 0, %s57
      %s72 = sphi 0, %s58
      %s76 = sphi 0, %s76
      %s78 = sphi 0, %s76
      %s79 = sphi 0, %s78
      %s93 = sphi 0, %s79
      %s99 = sphi 0, %s101
      %s102 = sphi 0, %s99
      %s103 = sphi 0, %s102
      %s119 = sphi 0, %s103
    $region4: #{tpu_custom_call.1} parent=1 // loop_header_branch
      %24 = sbr.rel (%p22) target = $region8
    $region5: #{tpu_custom_call.1} parent=1 // loop_body
      %s26 = ssub.s32 %s21, 1
      %s27 = ssub.s32 %s21, 2
      %s28 = sadd.s32 %s21, 1
      %s29 = ssub.s32 %s21, %s28
      %p30 = scmp.eq.s32.totalorder %s29, 0
      %s32 = sadd.s32 %s31, 1
      %s33 = scalar_select %p30, %s31, %s32
      %p36 = pneg %p30
      %p37 = scmp.eq.s32.totalorder %s21, 1
      %p38 = por %p36, %p37
      %p39 = scmp.ne.s32.totalorder %s31, %s34
      %p40 = scmp.eq.s32.totalorder %s21, 0
      %p41 = por %p39, %p40
      %p42 = scmp.ne.s32.totalorder %s31, %s34
      %p43 = scmp.eq.s32.totalorder %s26, 1
      %p44 = por %p42, %p43
      %p45 = scmp.ne.s32.totalorder %s34, %s35
      %p46 = scmp.eq.s32.totalorder %s26, 0
      %p47 = por %p45, %p46
      %p48 = scmp.ne.s32.totalorder %s34, %s35
      %p49 = scmp.eq.s32.totalorder %s27, 1
      %p50 = por %p48, %p49
      %p52 = scmp.ne.s32.totalorder %s35, %s51
      %p53 = scmp.eq.s32.totalorder %s27, 0
      %p54 = por %p52, %p53
      %s56 = sadd.s32 %s55, 1
      %p59 = scmp.eq.s32.totalorder %s21, 1
      %p60 = scmp.ne.s32.totalorder %s55, %s57
      %p61 = scmp.eq.s32.totalorder %s21, 0
      %p62 = por %p60, %p61
      %p63 = scmp.ne.s32.totalorder %s55, %s57
      %p64 = scmp.eq.s32.totalorder %s26, 1
      %p65 = por %p63, %p64
      %p66 = scmp.ne.s32.totalorder %s57, %s58
      %p67 = scmp.eq.s32.totalorder %s26, 0
      %p68 = por %p66, %p67
      %p69 = scmp.ne.s32.totalorder %s57, %s58
      %p70 = scmp.eq.s32.totalorder %s27, 1
      %p71 = por %p69, %p70
      %p73 = scmp.ne.s32.totalorder %s58, %s72
      %p74 = scmp.eq.s32.totalorder %s27, 0
      %p75 = por %p73, %p74
      %s77 = sadd.s32 %s76, 1
      %p80 = scmp.eq.s32.totalorder %s21, 1
      %p81 = scmp.ne.s32.totalorder %s76, %s78
      %p82 = scmp.eq.s32.totalorder %s21, 0
      %p83 = por %p81, %p82
      %p84 = scmp.ne.s32.totalorder %s76, %s78
      %p85 = scmp.eq.s32.totalorder %s26, 1
      %p86 = por %p84, %p85
      %p87 = scmp.ne.s32.totalorder %s78, %s79
      %p88 = scmp.eq.s32.totalorder %s26, 0
      %p89 = por %p87, %p88
      %p90 = scmp.ne.s32.totalorder %s78, %s79
      %p91 = scmp.eq.s32.totalorder %s27, 1
      %p92 = por %p90, %p91
      %p94 = scmp.ne.s32.totalorder %s79, %s93
      %p95 = scmp.eq.s32.totalorder %s27, 0
      %p96 = por %p94, %p95
      %s97 = ssub.s32 %s21, %s28
      %p98 = scmp.eq.s32.totalorder %s97, 0
      %s100 = sadd.s32 %s99, 1
      %s101 = scalar_select %p98, %s99, %s100
      %p104 = pneg %p98
      %p105 = scmp.eq.s32.totalorder %s21, 1
      %p106 = por %p104, %p105
      %p107 = scmp.ne.s32.totalorder %s99, %s102
      %p108 = scmp.eq.s32.totalorder %s21, 0
      %p109 = por %p107, %p108
      %p110 = scmp.ne.s32.totalorder %s99, %s102
      %p111 = scmp.eq.s32.totalorder %s26, 1
      %p112 = por %p110, %p111
      %p113 = scmp.ne.s32.totalorder %s102, %s103
      %p114 = scmp.eq.s32.totalorder %s26, 0
      %p115 = por %p113, %p114
      %p116 = scmp.ne.s32.totalorder %s102, %s103
      %p117 = scmp.eq.s32.totalorder %s27, 1
      %p118 = por %p116, %p117
      %p120 = scmp.ne.s32.totalorder %s103, %s119
      %p121 = scmp.eq.s32.totalorder %s27, 0
      %p122 = por %p120, %p121
      %p123 = scmp.le.s32.totalorder 1, %s21
      %p124 = scmp.lt.s32.totalorder %s21, 3
      %p125 = pnand %p123, %p124
      %p126 = pneg %p125
      // Predicated region
      $region9: #{tpu_custom_call.1} parent=5 // pred_check
        _
      $region10: #{tpu_custom_call.1} parent=5 // pred_check_branch
        %128 = sbr.rel (%p125) target = $region12
      $region11: #{tpu_custom_call.1} parent=5 // pred_region
        %s129 = ssub.s32 %s21, 1
        // Predicated region
        $region13: #{tpu_custom_call.1} parent=11 // pred_check
          %p130 = pneg %p68
        $region14: #{tpu_custom_call.1} parent=11 // pred_check_branch
          %132 = sbr.rel (%p130) target = $region16
        $region15: #{tpu_custom_call.1} parent=11 // pred_region
          %s134 = ssub.s32 1024, 1024
          %135 = vsyncadd [#allocation8], %s134
          %s136 = sshll.u32 [#allocation7], 4
          %s137 = int_to_ptr.vmem [resolvable:$true] %s136
          %142 = dma.hbm_to_vmem [thread:$0]  %s2, 1024, %s137, [#allocation8], 64, 64, 4
        $region16: #{tpu_custom_call.1} parent=11 // pred_fallthru
          _
        // Predicated region
        $region17: #{tpu_custom_call.1} parent=11 // pred_check
          %p143 = pneg %p89
        $region18: #{tpu_custom_call.1} parent=11 // pred_check_branch
          %145 = sbr.rel (%p143) target = $region20
        $region19: #{tpu_custom_call.1} parent=11 // pred_region
          _
        $region20: #{tpu_custom_call.1} parent=11 // pred_fallthru
          _
      $region12: #{tpu_custom_call.1} parent=5 // pred_fallthru
        _
      %p146 = scmp.lt.s32.totalorder %s21, 2
      // Predicated region
      $region21: #{tpu_custom_call.1} parent=5 // pred_check
        %p147 = pneg %p146
      $region22: #{tpu_custom_call.1} parent=5 // pred_check_branch
        %149 = sbr.rel (%p147) target = $region24
      $region23: #{tpu_custom_call.1} parent=5 // pred_region
        // Predicated region
        $region25: #{tpu_custom_call.1} parent=23 // pred_check
          %p150 = pneg %p41
        $region26: #{tpu_custom_call.1} parent=23 // pred_check_branch
          %152 = sbr.rel (%p150) target = $region28
        $region27: #{tpu_custom_call.1} parent=23 // pred_region
          %s153 = sand.u32 %s31, 1
          %s154 = scalar_lea.sflag [#allocation5], %s153
          %s155 = sand.u32 %s31, 1
          %s156 = smul.addr %s155, 256
          %s157 = scalar_lea.vmem [#allocation4], %s156
          %s158 = smul.u32 4, %s21
          %s160 = ssub.s32 4096, 4096
          %161 = vsyncadd %s154, %s160
          %s162 = smul.addr %s158, 16
          %s163 = smul.addr %s162, 64
          %s164 = scalar_lea.hbm %s1, %s163
          %s165 = sshll.u32 %s157, 4
          %s166 = int_to_ptr.vmem [resolvable:$true] %s165
          %171 = dma.hbm_to_vmem [thread:$0]  %s164, 4096, %s166, %s154, 64, 64, 4
        $region28: #{tpu_custom_call.1} parent=23 // pred_fallthru
          _
      $region24: #{tpu_custom_call.1} parent=5 // pred_fallthru
        _
      %p172 = scmp.le.s32.totalorder 1, %s21
      %p173 = scmp.lt.s32.totalorder %s21, 3
      %p174 = pnand %p172, %p173
      %p175 = pneg %p174
      // Predicated region
      $region29: #{tpu_custom_call.1} parent=5 // pred_check
        _
      $region30: #{tpu_custom_call.1} parent=5 // pred_check_branch
        %177 = sbr.rel (%p174) target = $region32
      $region31: #{tpu_custom_call.1} parent=5 // pred_region
        %s178 = ssub.s32 %s21, 1
        %s179 = sand.u32 %s34, 1
        %s180 = scalar_lea.sflag [#allocation5], %s179
        %s181 = sand.u32 %s34, 1
        %s182 = smul.addr %s181, 256
        %s183 = scalar_lea.vmem [#allocation4], %s182
        // Predicated region
        $region33: #{tpu_custom_call.1} parent=31 // pred_check
          %p184 = pneg %p47
        $region34: #{tpu_custom_call.1} parent=31 // pred_check_branch
          %186 = sbr.rel (%p184) target = $region36
        $region35: #{tpu_custom_call.1} parent=31 // pred_region
          %187 = dma.done %s180, 4096
        $region36: #{tpu_custom_call.1} parent=31 // pred_fallthru
          _
        // Predicated region
        $region37: #{tpu_custom_call.1} parent=31 // pred_check
          %p188 = pneg %p68
        $region38: #{tpu_custom_call.1} parent=31 // pred_check_branch
          %190 = sbr.rel (%p188) target = $region40
        $region39: #{tpu_custom_call.1} parent=31 // pred_region
          %191 = dma.done [#allocation8], 1024
        $region40: #{tpu_custom_call.1} parent=31 // pred_fallthru
          _
        %s192 = sand.u32 %s34, 1
        %s193 = scalar_lea.sflag [#allocation5], %s192
        %s194 = sand.u32 %s34, 1
        %s195 = smul.addr %s194, 256
        %s196 = scalar_lea.vmem [#allocation4], %s195
        %p197 = pneg %p47
        %p198 = pneg %p44
        %p199 = pneg %p68
        %p200 = pneg %p65
        %p201 = pneg %p89
        %p202 = pneg %p86
        %p203 = pneg %p115
        %p204 = pneg %p112
        %s205 = sand.u32 %s102, 1
        %s206 = scalar_lea.sflag [#allocation6], %s205
        %s207 = sand.u32 %s102, 1
        %s208 = smul.addr %s207, 512
        %s209 = scalar_lea.vmem [#allocation9], %s208
        %s210 = smul.u32 4, %s26
        %s211 = smul.u32 4, %s26
        %v213 = vld [vmem:[%s183] sm:$0xf]
        %v214 = vld [vmem:[%s183 + $0x4] sm:$0xf]
        %v215 = vld [vmem:[%s183 + $0x8] sm:$0xf]
        %v216 = vld [vmem:[%s183 + $0xc] sm:$0xf]
        %v217 = vld [vmem:[%s183 + $0x10] sm:$0xf]
        %v218 = vld [vmem:[%s183 + $0x14] sm:$0xf]
        %v219 = vld [vmem:[%s183 + $0x18] sm:$0xf]
        %v220 = vld [vmem:[%s183 + $0x1c] sm:$0xf]
        %v221 = vld [vmem:[%s183 + $0x20] sm:$0xf]
        %v222 = vld [vmem:[%s183 + $0x24] sm:$0xf]
        %v223 = vld [vmem:[%s183 + $0x28] sm:$0xf]
        %v224 = vld [vmem:[%s183 + $0x2c] sm:$0xf]
        %v225 = vld [vmem:[%s183 + $0x30] sm:$0xf]
        %v226 = vld [vmem:[%s183 + $0x34] sm:$0xf]
        %v227 = vld [vmem:[%s183 + $0x38] sm:$0xf]
        %v228 = vld [vmem:[%s183 + $0x3c] sm:$0xf]
        %v229 = vld [vmem:[%s183 + $0x40] sm:$0xf]
        %v230 = vld [vmem:[%s183 + $0x44] sm:$0xf]
        %v231 = vld [vmem:[%s183 + $0x48] sm:$0xf]
        %v232 = vld [vmem:[%s183 + $0x4c] sm:$0xf]
        %v233 = vld [vmem:[%s183 + $0x50] sm:$0xf]
        %v234 = vld [vmem:[%s183 + $0x54] sm:$0xf]
        %v235 = vld [vmem:[%s183 + $0x58] sm:$0xf]
        %v236 = vld [vmem:[%s183 + $0x5c] sm:$0xf]
        %v237 = vld [vmem:[%s183 + $0x60] sm:$0xf]
        %v238 = vld [vmem:[%s183 + $0x64] sm:$0xf]
        %v239 = vld [vmem:[%s183 + $0x68] sm:$0xf]
        %v240 = vld [vmem:[%s183 + $0x6c] sm:$0xf]
        %v241 = vld [vmem:[%s183 + $0x70] sm:$0xf]
        %v242 = vld [vmem:[%s183 + $0x74] sm:$0xf]
        %v243 = vld [vmem:[%s183 + $0x78] sm:$0xf]
        %v244 = vld [vmem:[%s183 + $0x7c] sm:$0xf]
        %v245 = vld [vmem:[%s183 + $0x80] sm:$0xf]
        %v246 = vld [vmem:[%s183 + $0x84] sm:$0xf]
        %v247 = vld [vmem:[%s183 + $0x88] sm:$0xf]
        %v248 = vld [vmem:[%s183 + $0x8c] sm:$0xf]
        %v249 = vld [vmem:[%s183 + $0x90] sm:$0xf]
        %v250 = vld [vmem:[%s183 + $0x94] sm:$0xf]
        %v251 = vld [vmem:[%s183 + $0x98] sm:$0xf]
        %v252 = vld [vmem:[%s183 + $0x9c] sm:$0xf]
        %v253 = vld [vmem:[%s183 + $0xa0] sm:$0xf]
        %v254 = vld [vmem:[%s183 + $0xa4] sm:$0xf]
        %v255 = vld [vmem:[%s183 + $0xa8] sm:$0xf]
        %v256 = vld [vmem:[%s183 + $0xac] sm:$0xf]
        %v257 = vld [vmem:[%s183 + $0xb0] sm:$0xf]
        %v258 = vld [vmem:[%s183 + $0xb4] sm:$0xf]
        %v259 = vld [vmem:[%s183 + $0xb8] sm:$0xf]
        %v260 = vld [vmem:[%s183 + $0xbc] sm:$0xf]
        %v261 = vld [vmem:[%s183 + $0xc0] sm:$0xf]
        %v262 = vld [vmem:[%s183 + $0xc4] sm:$0xf]
        %v263 = vld [vmem:[%s183 + $0xc8] sm:$0xf]
        %v264 = vld [vmem:[%s183 + $0xcc] sm:$0xf]
        %v265 = vld [vmem:[%s183 + $0xd0] sm:$0xf]
        %v266 = vld [vmem:[%s183 + $0xd4] sm:$0xf]
        %v267 = vld [vmem:[%s183 + $0xd8] sm:$0xf]
        %v268 = vld [vmem:[%s183 + $0xdc] sm:$0xf]
        %v269 = vld [vmem:[%s183 + $0xe0] sm:$0xf]
        %v270 = vld [vmem:[%s183 + $0xe4] sm:$0xf]
        %v271 = vld [vmem:[%s183 + $0xe8] sm:$0xf]
        %v272 = vld [vmem:[%s183 + $0xec] sm:$0xf]
        %v273 = vld [vmem:[%s183 + $0xf0] sm:$0xf]
        %v274 = vld [vmem:[%s183 + $0xf4] sm:$0xf]
        %v275 = vld [vmem:[%s183 + $0xf8] sm:$0xf]
        %v276 = vld [vmem:[%s183 + $0xfc] sm:$0xf]
        %v277 = vld [vmem:[#allocation7] sm:$0xf]
        %v278 = vld [vmem:[#allocation7 + $0x4] sm:$0xf]
        %v279 = vld [vmem:[#allocation7 + $0x8] sm:$0xf]
        %v280 = vld [vmem:[#allocation7 + $0xc] sm:$0xf]
        %v281 = vld [vmem:[#allocation7 + $0x10] sm:$0xf]
        %v282 = vld [vmem:[#allocation7 + $0x14] sm:$0xf]
        %v283 = vld [vmem:[#allocation7 + $0x18] sm:$0xf]
        %v284 = vld [vmem:[#allocation7 + $0x1c] sm:$0xf]
        %v285 = vld [vmem:[#allocation7 + $0x20] sm:$0xf]
        %v286 = vld [vmem:[#allocation7 + $0x24] sm:$0xf]
        %v287 = vld [vmem:[#allocation7 + $0x28] sm:$0xf]
        %v288 = vld [vmem:[#allocation7 + $0x2c] sm:$0xf]
        %v289 = vld [vmem:[#allocation7 + $0x30] sm:$0xf]
        %v290 = vld [vmem:[#allocation7 + $0x34] sm:$0xf]
        %v291 = vld [vmem:[#allocation7 + $0x38] sm:$0xf]
        %v292 = vld [vmem:[#allocation7 + $0x3c] sm:$0xf]
        %v293 = vld [vmem:[%s3] sm:$0x1]
        %v295 = vlaneseq
        %v296 = vshrl.u32 %v295, 7
        %v297 = vsub.s32 0, %v296
        %v298 = vrot.slane %v293, %v297
        %v364 = vunpack.c.l.b16 %v213
        %v365 = vunpack.c.l.b16 %v214
        %v366 = vunpack.c.l.b16 %v215
        %v367 = vunpack.c.l.b16 %v216
        %v368 = vunpack.c.l.b16 %v217
        %v369 = vunpack.c.l.b16 %v218
        %v370 = vunpack.c.l.b16 %v219
        %v371 = vunpack.c.l.b16 %v220
        %v372 = vunpack.c.l.b16 %v221
        %v373 = vunpack.c.l.b16 %v222
        %v374 = vunpack.c.l.b16 %v223
        %v375 = vunpack.c.l.b16 %v224
        %v376 = vunpack.c.l.b16 %v225
        %v377 = vunpack.c.l.b16 %v226
        %v378 = vunpack.c.l.b16 %v227
        %v379 = vunpack.c.l.b16 %v228
        %v380 = vunpack.c.l.b16 %v229
        %v381 = vunpack.c.l.b16 %v230
        %v382 = vunpack.c.l.b16 %v231
        %v383 = vunpack.c.l.b16 %v232
        %v384 = vunpack.c.l.b16 %v233
        %v385 = vunpack.c.l.b16 %v234
        %v386 = vunpack.c.l.b16 %v235
        %v387 = vunpack.c.l.b16 %v236
        %v388 = vunpack.c.l.b16 %v237
        %v389 = vunpack.c.l.b16 %v238
        %v390 = vunpack.c.l.b16 %v239
        %v391 = vunpack.c.l.b16 %v240
        %v392 = vunpack.c.l.b16 %v241
        %v393 = vunpack.c.l.b16 %v242
        %v394 = vunpack.c.l.b16 %v243
        %v395 = vunpack.c.l.b16 %v244
        %v396 = vunpack.c.l.b16 %v245
        %v397 = vunpack.c.l.b16 %v246
        %v398 = vunpack.c.l.b16 %v247
        %v399 = vunpack.c.l.b16 %v248
        %v400 = vunpack.c.l.b16 %v249
        %v401 = vunpack.c.l.b16 %v250
        %v402 = vunpack.c.l.b16 %v251
        %v403 = vunpack.c.l.b16 %v252
        %v404 = vunpack.c.l.b16 %v253
        %v405 = vunpack.c.l.b16 %v254
        %v406 = vunpack.c.l.b16 %v255
        %v407 = vunpack.c.l.b16 %v256
        %v408 = vunpack.c.l.b16 %v257
        %v409 = vunpack.c.l.b16 %v258
        %v410 = vunpack.c.l.b16 %v259
        %v411 = vunpack.c.l.b16 %v260
        %v412 = vunpack.c.l.b16 %v261
        %v413 = vunpack.c.l.b16 %v262
        %v414 = vunpack.c.l.b16 %v263
        %v415 = vunpack.c.l.b16 %v264
        %v416 = vunpack.c.l.b16 %v265
        %v417 = vunpack.c.l.b16 %v266
        %v418 = vunpack.c.l.b16 %v267
        %v419 = vunpack.c.l.b16 %v268
        %v420 = vunpack.c.l.b16 %v269
        %v421 = vunpack.c.l.b16 %v270
        %v422 = vunpack.c.l.b16 %v271
        %v423 = vunpack.c.l.b16 %v272
        %v424 = vunpack.c.l.b16 %v273
        %v425 = vunpack.c.l.b16 %v274
        %v426 = vunpack.c.l.b16 %v275
        %v427 = vunpack.c.l.b16 %v276
        %v428 = vpack.c.b16 %v365, %v364
        %v429 = vpack.c.b16 %v367, %v366
        %v430 = vpack.c.b16 %v369, %v368
        %v431 = vpack.c.b16 %v371, %v370
        %v432 = vpack.c.b16 %v373, %v372
        %v433 = vpack.c.b16 %v375, %v374
        %v434 = vpack.c.b16 %v377, %v376
        %v435 = vpack.c.b16 %v379, %v378
        %v436 = vpack.c.b16 %v381, %v380
        %v437 = vpack.c.b16 %v383, %v382
        %v438 = vpack.c.b16 %v385, %v384
        %v439 = vpack.c.b16 %v387, %v386
        %v440 = vpack.c.b16 %v389, %v388
        %v441 = vpack.c.b16 %v391, %v390
        %v442 = vpack.c.b16 %v393, %v392
        %v443 = vpack.c.b16 %v395, %v394
        %v444 = vpack.c.b16 %v397, %v396
        %v445 = vpack.c.b16 %v399, %v398
        %v446 = vpack.c.b16 %v401, %v400
        %v447 = vpack.c.b16 %v403, %v402
        %v448 = vpack.c.b16 %v405, %v404
        %v449 = vpack.c.b16 %v407, %v406
        %v450 = vpack.c.b16 %v409, %v408
        %v451 = vpack.c.b16 %v411, %v410
        %v452 = vpack.c.b16 %v413, %v412
        %v453 = vpack.c.b16 %v415, %v414
        %v454 = vpack.c.b16 %v417, %v416
        %v455 = vpack.c.b16 %v419, %v418
        %v456 = vpack.c.b16 %v421, %v420
        %v457 = vpack.c.b16 %v423, %v422
        %v458 = vpack.c.b16 %v425, %v424
        %v459 = vpack.c.b16 %v427, %v426
        %v508 = vunpack.c.l.b16 %v277
        %v509 = vunpack.c.l.b16 %v278
        %v510 = vunpack.c.l.b16 %v279
        %v511 = vunpack.c.l.b16 %v280
        %v512 = vunpack.c.l.b16 %v281
        %v513 = vunpack.c.l.b16 %v282
        %v514 = vunpack.c.l.b16 %v283
        %v515 = vunpack.c.l.b16 %v284
        %v516 = vunpack.c.l.b16 %v285
        %v517 = vunpack.c.l.b16 %v286
        %v518 = vunpack.c.l.b16 %v287
        %v519 = vunpack.c.l.b16 %v288
        %v520 = vunpack.c.l.b16 %v289
        %v521 = vunpack.c.l.b16 %v290
        %v522 = vunpack.c.l.b16 %v291
        %v523 = vunpack.c.l.b16 %v292
        %v524 = vpack.c.b16 %v509, %v508
        %v525 = vpack.c.b16 %v511, %v510
        %v526 = vpack.c.b16 %v513, %v512
        %v527 = vpack.c.b16 %v515, %v514
        %v528 = vpack.c.b16 %v517, %v516
        %v529 = vpack.c.b16 %v519, %v518
        %v530 = vpack.c.b16 %v521, %v520
        %v531 = vpack.c.b16 %v523, %v522
        %540 = vmatprep.subr.bf16.mxu0 0
        %541 = vmatpush1.bf16.msra.mxu0 %v524
        %542 = vmatprep.subr.bf16.mxu0 0
        %543 = vmatpush1.bf16.msra.mxu0 %v525
        %544 = vmatprep.subr.bf16.mxu0 0
        %545 = vmatpush1.bf16.msra.mxu0 %v526
        %546 = vmatprep.subr.bf16.mxu0 0
        %547 = vmatpush1.bf16.msra.mxu0 %v527
        %548 = vmatprep.subr.bf16.mxu0 0
        %549 = vmatpush1.bf16.msra.mxu0 %v528
        %550 = vmatprep.subr.bf16.mxu0 0
        %551 = vmatpush1.bf16.msra.mxu0 %v529
        %552 = vmatprep.subr.bf16.mxu0 0
        %553 = vmatpush1.bf16.msra.mxu0 %v530
        %554 = vmatprep.subr.bf16.mxu0 0
        %555 = vmatpush1.bf16.msra.mxu0 %v531
        %556 = vmatprep.subr.bf16.mxu0 0
        %557 = vmatpush1.bf16.msra.mxu0 0
        %558 = vmatprep.subr.bf16.mxu0 0
        %559 = vmatpush1.bf16.msra.mxu0 0
        %560 = vmatprep.subr.bf16.mxu0 0
        %561 = vmatpush1.bf16.msra.mxu0 0
        %562 = vmatprep.subr.bf16.mxu0 0
        %563 = vmatpush1.bf16.msra.mxu0 0
        %564 = vmatprep.subr.bf16.mxu0 0
        %565 = vmatpush1.bf16.msra.mxu0 0
        %566 = vmatprep.subr.bf16.mxu0 0
        %567 = vmatpush1.bf16.msra.mxu0 0
        %568 = vmatprep.subr.bf16.mxu0 0
        %569 = vmatpush1.bf16.msra.mxu0 0
        %570 = vmatprep.subr.bf16.mxu0 0
        %571 = vmatpush1.bf16.msra.mxu0 0
        %572 = vmatprep.mubr.bf16.mxu0 0
        %573 = vmatmul.mubr.bf16.gmra.mrb[0].mxu0 %v428
        %v574 = vpop.f32.mrb[0].mxu0
        %v575 = vadd.f32 %v298, %v574
        %v576 = vpop.f32.mrb[0].mxu0
        %v577 = vpop.f32.mrb[0].mxu0
        %v578 = vadd.f32 %v298, %v577
        %v579 = vpop.f32.mrb[0].mxu0
        %580 = vmatprep.mubr.bf16.mxu0 0
        %581 = vmatmul.mubr.bf16.gmra.mrb[0].mxu0 %v429
        %v582 = vpop.f32.mrb[0].mxu0
        %v583 = vadd.f32 %v298, %v582
        %v584 = vpop.f32.mrb[0].mxu0
        %v585 = vpop.f32.mrb[0].mxu0
        %v586 = vadd.f32 %v298, %v585
        %v587 = vpop.f32.mrb[0].mxu0
        %588 = vmatprep.mubr.bf16.mxu0 0
        %589 = vmatmul.mubr.bf16.gmra.mrb[0].mxu0 %v430
        %v590 = vpop.f32.mrb[0].mxu0
        %v591 = vadd.f32 %v298, %v590
        %v592 = vpop.f32.mrb[0].mxu0
        %v593 = vpop.f32.mrb[0].mxu0
        %v594 = vadd.f32 %v298, %v593
        %v595 = vpop.f32.mrb[0].mxu0
        %596 = vmatprep.mubr.bf16.mxu0 0
        %597 = vmatmul.mubr.bf16.gmra.mrb[0].mxu0 %v431
        %v598 = vpop.f32.mrb[0].mxu0
        %v599 = vadd.f32 %v298, %v598
        %v600 = vpop.f32.mrb[0].mxu0
        %v601 = vpop.f32.mrb[0].mxu0
        %v602 = vadd.f32 %v298, %v601
        %v603 = vpop.f32.mrb[0].mxu0
        %604 = vmatprep.mubr.bf16.mxu0 0
        %605 = vmatmul.mubr.bf16.gmra.mrb[0].mxu0 %v432
        %v606 = vpop.f32.mrb[0].mxu0
        %v607 = vadd.f32 %v298, %v606
        %v608 = vpop.f32.mrb[0].mxu0
        %v609 = vpop.f32.mrb[0].mxu0
        %v610 = vadd.f32 %v298, %v609
        %v611 = vpop.f32.mrb[0].mxu0
        %612 = vmatprep.mubr.bf16.mxu0 0
        %613 = vmatmul.mubr.bf16.gmra.mrb[0].mxu0 %v433
        %v614 = vpop.f32.mrb[0].mxu0
        %v615 = vadd.f32 %v298, %v614
        %v616 = vpop.f32.mrb[0].mxu0
        %v617 = vpop.f32.mrb[0].mxu0
        %v618 = vadd.f32 %v298, %v617
        %v619 = vpop.f32.mrb[0].mxu0
        %620 = vmatprep.mubr.bf16.mxu0 0
        %621 = vmatmul.mubr.bf16.gmra.mrb[0].mxu0 %v434
        %v622 = vpop.f32.mrb[0].mxu0
        %v623 = vadd.f32 %v298, %v622
        %v624 = vpop.f32.mrb[0].mxu0
        %v625 = vpop.f32.mrb[0].mxu0
        %v626 = vadd.f32 %v298, %v625
        %v627 = vpop.f32.mrb[0].mxu0
        %628 = vmatprep.mubr.bf16.mxu0 0
        %629 = vmatmul.mubr.bf16.gmra.mrb[0].mxu0 %v435
        %v630 = vpop.f32.mrb[0].mxu0
        %v631 = vadd.f32 %v298, %v630
        %v632 = vpop.f32.mrb[0].mxu0
        %v633 = vpop.f32.mrb[0].mxu0
        %v634 = vadd.f32 %v298, %v633
        %v635 = vpop.f32.mrb[0].mxu0
        %636 = vmatprep.mubr.bf16.mxu0 0
        %637 = vmatmul.mubr.bf16.gmra.mrb[0].mxu0 %v436
        %v638 = vpop.f32.mrb[0].mxu0
        %v639 = vadd.f32 %v298, %v638
        %v640 = vpop.f32.mrb[0].mxu0
        %v641 = vpop.f32.mrb[0].mxu0
        %v642 = vadd.f32 %v298, %v641
        %v643 = vpop.f32.mrb[0].mxu0
        %644 = vmatprep.mubr.bf16.mxu0 0
        %645 = vmatmul.mubr.bf16.gmra.mrb[0].mxu0 %v437
        %v646 = vpop.f32.mrb[0].mxu0
        %v647 = vadd.f32 %v298, %v646
        %v648 = vpop.f32.mrb[0].mxu0
        %v649 = vpop.f32.mrb[0].mxu0
        %v650 = vadd.f32 %v298, %v649
        %v651 = vpop.f32.mrb[0].mxu0
        %652 = vmatprep.mubr.bf16.mxu0 0
        %653 = vmatmul.mubr.bf16.gmra.mrb[0].mxu0 %v438
        %v654 = vpop.f32.mrb[0].mxu0
        %v655 = vadd.f32 %v298, %v654
        %v656 = vpop.f32.mrb[0].mxu0
        %v657 = vpop.f32.mrb[0].mxu0
        %v658 = vadd.f32 %v298, %v657
        %v659 = vpop.f32.mrb[0].mxu0
        %660 = vmatprep.mubr.bf16.mxu0 0
        %661 = vmatmul.mubr.bf16.gmra.mrb[0].mxu0 %v439
        %v662 = vpop.f32.mrb[0].mxu0
        %v663 = vadd.f32 %v298, %v662
        %v664 = vpop.f32.mrb[0].mxu0
        %v665 = vpop.f32.mrb[0].mxu0
        %v666 = vadd.f32 %v298, %v665
        %v667 = vpop.f32.mrb[0].mxu0
        %668 = vmatprep.mubr.bf16.mxu0 0
        %669 = vmatmul.mubr.bf16.gmra.mrb[0].mxu0 %v440
        %v670 = vpop.f32.mrb[0].mxu0
        %v671 = vadd.f32 %v298, %v670
        %v672 = vpop.f32.mrb[0].mxu0
        %v673 = vpop.f32.mrb[0].mxu0
        %v674 = vadd.f32 %v298, %v673
        %v675 = vpop.f32.mrb[0].mxu0
        %676 = vmatprep.mubr.bf16.mxu0 0
        %677 = vmatmul.mubr.bf16.gmra.mrb[0].mxu0 %v441
        %v678 = vpop.f32.mrb[0].mxu0
        %v679 = vadd.f32 %v298, %v678
        %v680 = vpop.f32.mrb[0].mxu0
        %v681 = vpop.f32.mrb[0].mxu0
        %v682 = vadd.f32 %v298, %v681
        %v683 = vpop.f32.mrb[0].mxu0
        %684 = vmatprep.mubr.bf16.mxu0 0
        %685 = vmatmul.mubr.bf16.gmra.mrb[0].mxu0 %v442
        %v686 = vpop.f32.mrb[0].mxu0
        %v687 = vadd.f32 %v298, %v686
        %v688 = vpop.f32.mrb[0].mxu0
        %v689 = vpop.f32.mrb[0].mxu0
        %v690 = vadd.f32 %v298, %v689
        %v691 = vpop.f32.mrb[0].mxu0
        %692 = vmatprep.mubr.bf16.mxu0 0
        %693 = vmatmul.mubr.bf16.gmra.mrb[0].mxu0 %v443
        %v694 = vpop.f32.mrb[0].mxu0
        %v695 = vadd.f32 %v298, %v694
        %v696 = vpop.f32.mrb[0].mxu0
        %v697 = vpop.f32.mrb[0].mxu0
        %v698 = vadd.f32 %v298, %v697
        %v699 = vpop.f32.mrb[0].mxu0
        %700 = vmatprep.mubr.bf16.mxu0 0
        %701 = vmatmul.mubr.bf16.gmra.mrb[0].mxu0 %v444
        %v702 = vpop.f32.mrb[0].mxu0
        %v703 = vadd.f32 %v298, %v702
        %v704 = vpop.f32.mrb[0].mxu0
        %v705 = vpop.f32.mrb[0].mxu0
        %v706 = vadd.f32 %v298, %v705
        %v707 = vpop.f32.mrb[0].mxu0
        %708 = vmatprep.mubr.bf16.mxu0 0
        %709 = vmatmul.mubr.bf16.gmra.mrb[0].mxu0 %v445
        %v710 = vpop.f32.mrb[0].mxu0
        %v711 = vadd.f32 %v298, %v710
        %v712 = vpop.f32.mrb[0].mxu0
        %v713 = vpop.f32.mrb[0].mxu0
        %v714 = vadd.f32 %v298, %v713
        %v715 = vpop.f32.mrb[0].mxu0
        %716 = vmatprep.mubr.bf16.mxu0 0
        %717 = vmatmul.mubr.bf16.gmra.mrb[0].mxu0 %v446
        %v718 = vpop.f32.mrb[0].mxu0
        %v719 = vadd.f32 %v298, %v718
        %v720 = vpop.f32.mrb[0].mxu0
        %v721 = vpop.f32.mrb[0].mxu0
        %v722 = vadd.f32 %v298, %v721
        %v723 = vpop.f32.mrb[0].mxu0
        %724 = vmatprep.mubr.bf16.mxu0 0
        %725 = vmatmul.mubr.bf16.gmra.mrb[0].mxu0 %v447
        %v726 = vpop.f32.mrb[0].mxu0
        %v727 = vadd.f32 %v298, %v726
        %v728 = vpop.f32.mrb[0].mxu0
        %v729 = vpop.f32.mrb[0].mxu0
        %v730 = vadd.f32 %v298, %v729
        %v731 = vpop.f32.mrb[0].mxu0
        %732 = vmatprep.mubr.bf16.mxu0 0
        %733 = vmatmul.mubr.bf16.gmra.mrb[0].mxu0 %v448
        %v734 = vpop.f32.mrb[0].mxu0
        %v735 = vadd.f32 %v298, %v734
        %v736 = vpop.f32.mrb[0].mxu0
        %v737 = vpop.f32.mrb[0].mxu0
        %v738 = vadd.f32 %v298, %v737
        %v739 = vpop.f32.mrb[0].mxu0
        %740 = vmatprep.mubr.bf16.mxu0 0
        %741 = vmatmul.mubr.bf16.gmra.mrb[0].mxu0 %v449
        %v742 = vpop.f32.mrb[0].mxu0
        %v743 = vadd.f32 %v298, %v742
        %v744 = vpop.f32.mrb[0].mxu0
        %v745 = vpop.f32.mrb[0].mxu0
        %v746 = vadd.f32 %v298, %v745
        %v747 = vpop.f32.mrb[0].mxu0
        %748 = vmatprep.mubr.bf16.mxu0 0
        %749 = vmatmul.mubr.bf16.gmra.mrb[0].mxu0 %v450
        %v750 = vpop.f32.mrb[0].mxu0
        %v751 = vadd.f32 %v298, %v750
        %v752 = vpop.f32.mrb[0].mxu0
        %v753 = vpop.f32.mrb[0].mxu0
        %v754 = vadd.f32 %v298, %v753
        %v755 = vpop.f32.mrb[0].mxu0
        %756 = vmatprep.mubr.bf16.mxu0 0
        %757 = vmatmul.mubr.bf16.gmra.mrb[0].mxu0 %v451
        %v758 = vpop.f32.mrb[0].mxu0
        %v759 = vadd.f32 %v298, %v758
        %v760 = vpop.f32.mrb[0].mxu0
        %v761 = vpop.f32.mrb[0].mxu0
        %v762 = vadd.f32 %v298, %v761
        %v763 = vpop.f32.mrb[0].mxu0
        %764 = vmatprep.mubr.bf16.mxu0 0
        %765 = vmatmul.mubr.bf16.gmra.mrb[0].mxu0 %v452
        %v766 = vpop.f32.mrb[0].mxu0
        %v767 = vadd.f32 %v298, %v766
        %v768 = vpop.f32.mrb[0].mxu0
        %v769 = vpop.f32.mrb[0].mxu0
        %v770 = vadd.f32 %v298, %v769
        %v771 = vpop.f32.mrb[0].mxu0
        %772 = vmatprep.mubr.bf16.mxu0 0
        %773 = vmatmul.mubr.bf16.gmra.mrb[0].mxu0 %v453
        %v774 = vpop.f32.mrb[0].mxu0
        %v775 = vadd.f32 %v298, %v774
        %v776 = vpop.f32.mrb[0].mxu0
        %v777 = vpop.f32.mrb[0].mxu0
        %v778 = vadd.f32 %v298, %v777
        %v779 = vpop.f32.mrb[0].mxu0
        %780 = vmatprep.mubr.bf16.mxu0 0
        %781 = vmatmul.mubr.bf16.gmra.mrb[0].mxu0 %v454
        %v782 = vpop.f32.mrb[0].mxu0
        %v783 = vadd.f32 %v298, %v782
        %v784 = vpop.f32.mrb[0].mxu0
        %v785 = vpop.f32.mrb[0].mxu0
        %v786 = vadd.f32 %v298, %v785
        %v787 = vpop.f32.mrb[0].mxu0
        %788 = vmatprep.mubr.bf16.mxu0 0
        %789 = vmatmul.mubr.bf16.gmra.mrb[0].mxu0 %v455
        %v790 = vpop.f32.mrb[0].mxu0
        %v791 = vadd.f32 %v298, %v790
        %v792 = vpop.f32.mrb[0].mxu0
        %v793 = vpop.f32.mrb[0].mxu0
        %v794 = vadd.f32 %v298, %v793
        %v795 = vpop.f32.mrb[0].mxu0
        %796 = vmatprep.mubr.bf16.mxu0 0
        %797 = vmatmul.mubr.bf16.gmra.mrb[0].mxu0 %v456
        %v798 = vpop.f32.mrb[0].mxu0
        %v799 = vadd.f32 %v298, %v798
        %v800 = vpop.f32.mrb[0].mxu0
        %v801 = vpop.f32.mrb[0].mxu0
        %v802 = vadd.f32 %v298, %v801
        %v803 = vpop.f32.mrb[0].mxu0
        %804 = vmatprep.mubr.bf16.mxu0 0
        %805 = vmatmul.mubr.bf16.gmra.mrb[0].mxu0 %v457
        %v806 = vpop.f32.mrb[0].mxu0
        %v807 = vadd.f32 %v298, %v806
        %v808 = vpop.f32.mrb[0].mxu0
        %v809 = vpop.f32.mrb[0].mxu0
        %v810 = vadd.f32 %v298, %v809
        %v811 = vpop.f32.mrb[0].mxu0
        %812 = vmatprep.mubr.bf16.mxu0 0
        %813 = vmatmul.mubr.bf16.gmra.mrb[0].mxu0 %v458
        %v814 = vpop.f32.mrb[0].mxu0
        %v815 = vadd.f32 %v298, %v814
        %v816 = vpop.f32.mrb[0].mxu0
        %v817 = vpop.f32.mrb[0].mxu0
        %v818 = vadd.f32 %v298, %v817
        %v819 = vpop.f32.mrb[0].mxu0
        %820 = vmatprep.mubr.bf16.mxu0 0
        %821 = vmatmul.mubr.bf16.gmra.mrb[0].mxu0 %v459
        %v822 = vpop.f32.mrb[0].mxu0
        %v823 = vadd.f32 %v298, %v822
        %v824 = vpop.f32.mrb[0].mxu0
        %v825 = vpop.f32.mrb[0].mxu0
        %v826 = vadd.f32 %v298, %v825
        %v827 = vpop.f32.mrb[0].mxu0
        %828 = vdwg.mxu0
        %v829 = vmul.f32 %v575, %v575
        %v830 = vmul.f32 %v578, %v578
        %v831 = vmul.f32 %v583, %v583
        %v832 = vmul.f32 %v586, %v586
        %v833 = vmul.f32 %v591, %v591
        %v834 = vmul.f32 %v594, %v594
        %v835 = vmul.f32 %v599, %v599
        %v836 = vmul.f32 %v602, %v602
        %v837 = vmul.f32 %v607, %v607
        %v838 = vmul.f32 %v610, %v610
        %v839 = vmul.f32 %v615, %v615
        %v840 = vmul.f32 %v618, %v618
        %v841 = vmul.f32 %v623, %v623
        %v842 = vmul.f32 %v626, %v626
        %v843 = vmul.f32 %v631, %v631
        %v844 = vmul.f32 %v634, %v634
        %v845 = vmul.f32 %v639, %v639
        %v846 = vmul.f32 %v642, %v642
        %v847 = vmul.f32 %v647, %v647
        %v848 = vmul.f32 %v650, %v650
        %v849 = vmul.f32 %v655, %v655
        %v850 = vmul.f32 %v658, %v658
        %v851 = vmul.f32 %v663, %v663
        %v852 = vmul.f32 %v666, %v666
        %v853 = vmul.f32 %v671, %v671
        %v854 = vmul.f32 %v674, %v674
        %v855 = vmul.f32 %v679, %v679
        %v856 = vmul.f32 %v682, %v682
        %v857 = vmul.f32 %v687, %v687
        %v858 = vmul.f32 %v690, %v690
        %v859 = vmul.f32 %v695, %v695
        %v860 = vmul.f32 %v698, %v698
        %v861 = vmul.f32 %v703, %v703
        %v862 = vmul.f32 %v706, %v706
        %v863 = vmul.f32 %v711, %v711
        %v864 = vmul.f32 %v714, %v714
        %v865 = vmul.f32 %v719, %v719
        %v866 = vmul.f32 %v722, %v722
        %v867 = vmul.f32 %v727, %v727
        %v868 = vmul.f32 %v730, %v730
        %v869 = vmul.f32 %v735, %v735
        %v870 = vmul.f32 %v738, %v738
        %v871 = vmul.f32 %v743, %v743
        %v872 = vmul.f32 %v746, %v746
        %v873 = vmul.f32 %v751, %v751
        %v874 = vmul.f32 %v754, %v754
        %v875 = vmul.f32 %v759, %v759
        %v876 = vmul.f32 %v762, %v762
        %v877 = vmul.f32 %v767, %v767
        %v878 = vmul.f32 %v770, %v770
        %v879 = vmul.f32 %v775, %v775
        %v880 = vmul.f32 %v778, %v778
        %v881 = vmul.f32 %v783, %v783
        %v882 = vmul.f32 %v786, %v786
        %v883 = vmul.f32 %v791, %v791
        %v884 = vmul.f32 %v794, %v794
        %v885 = vmul.f32 %v799, %v799
        %v886 = vmul.f32 %v802, %v802
        %v887 = vmul.f32 %v807, %v807
        %v888 = vmul.f32 %v810, %v810
        %v889 = vmul.f32 %v815, %v815
        %v890 = vmul.f32 %v818, %v818
        %v891 = vmul.f32 %v823, %v823
        %v892 = vmul.f32 %v826, %v826
        %893 = vadd.xlane.f32.xlu0 %v829
        %v894 = vpop.xlane.xlu0 %893
        %895 = vadd.xlane.f32.xlu0 %v830
        %v896 = vpop.xlane.xlu0 %895
        %897 = vadd.xlane.f32.xlu0 %v831
        %v898 = vpop.xlane.xlu0 %897
        %899 = vadd.xlane.f32.xlu0 %v832
        %v900 = vpop.xlane.xlu0 %899
        %901 = vadd.xlane.f32.xlu0 %v833
        %v902 = vpop.xlane.xlu0 %901
        %903 = vadd.xlane.f32.xlu0 %v834
        %v904 = vpop.xlane.xlu0 %903
        %905 = vadd.xlane.f32.xlu0 %v835
        %v906 = vpop.xlane.xlu0 %905
        %907 = vadd.xlane.f32.xlu0 %v836
        %v908 = vpop.xlane.xlu0 %907
        %909 = vadd.xlane.f32.xlu0 %v837
        %v910 = vpop.xlane.xlu0 %909
        %911 = vadd.xlane.f32.xlu0 %v838
        %v912 = vpop.xlane.xlu0 %911
        %913 = vadd.xlane.f32.xlu0 %v839
        %v914 = vpop.xlane.xlu0 %913
        %915 = vadd.xlane.f32.xlu0 %v840
        %v916 = vpop.xlane.xlu0 %915
        %917 = vadd.xlane.f32.xlu0 %v841
        %v918 = vpop.xlane.xlu0 %917
        %919 = vadd.xlane.f32.xlu0 %v842
        %v920 = vpop.xlane.xlu0 %919
        %921 = vadd.xlane.f32.xlu0 %v843
        %v922 = vpop.xlane.xlu0 %921
        %923 = vadd.xlane.f32.xlu0 %v844
        %v924 = vpop.xlane.xlu0 %923
        %925 = vadd.xlane.f32.xlu0 %v845
        %v926 = vpop.xlane.xlu0 %925
        %927 = vadd.xlane.f32.xlu0 %v846
        %v928 = vpop.xlane.xlu0 %927
        %929 = vadd.xlane.f32.xlu0 %v847
        %v930 = vpop.xlane.xlu0 %929
        %931 = vadd.xlane.f32.xlu0 %v848
        %v932 = vpop.xlane.xlu0 %931
        %933 = vadd.xlane.f32.xlu0 %v849
        %v934 = vpop.xlane.xlu0 %933
        %935 = vadd.xlane.f32.xlu0 %v850
        %v936 = vpop.xlane.xlu0 %935
        %937 = vadd.xlane.f32.xlu0 %v851
        %v938 = vpop.xlane.xlu0 %937
        %939 = vadd.xlane.f32.xlu0 %v852
        %v940 = vpop.xlane.xlu0 %939
        %941 = vadd.xlane.f32.xlu0 %v853
        %v942 = vpop.xlane.xlu0 %941
        %943 = vadd.xlane.f32.xlu0 %v854
        %v944 = vpop.xlane.xlu0 %943
        %945 = vadd.xlane.f32.xlu0 %v855
        %v946 = vpop.xlane.xlu0 %945
        %947 = vadd.xlane.f32.xlu0 %v856
        %v948 = vpop.xlane.xlu0 %947
        %949 = vadd.xlane.f32.xlu0 %v857
        %v950 = vpop.xlane.xlu0 %949
        %951 = vadd.xlane.f32.xlu0 %v858
        %v952 = vpop.xlane.xlu0 %951
        %953 = vadd.xlane.f32.xlu0 %v859
        %v954 = vpop.xlane.xlu0 %953
        %955 = vadd.xlane.f32.xlu0 %v860
        %v956 = vpop.xlane.xlu0 %955
        %957 = vadd.xlane.f32.xlu0 %v861
        %v958 = vpop.xlane.xlu0 %957
        %959 = vadd.xlane.f32.xlu0 %v862
        %v960 = vpop.xlane.xlu0 %959
        %961 = vadd.xlane.f32.xlu0 %v863
        %v962 = vpop.xlane.xlu0 %961
        %963 = vadd.xlane.f32.xlu0 %v864
        %v964 = vpop.xlane.xlu0 %963
        %965 = vadd.xlane.f32.xlu0 %v865
        %v966 = vpop.xlane.xlu0 %965
        %967 = vadd.xlane.f32.xlu0 %v866
        %v968 = vpop.xlane.xlu0 %967
        %969 = vadd.xlane.f32.xlu0 %v867
        %v970 = vpop.xlane.xlu0 %969
        %971 = vadd.xlane.f32.xlu0 %v868
        %v972 = vpop.xlane.xlu0 %971
        %973 = vadd.xlane.f32.xlu0 %v869
        %v974 = vpop.xlane.xlu0 %973
        %975 = vadd.xlane.f32.xlu0 %v870
        %v976 = vpop.xlane.xlu0 %975
        %977 = vadd.xlane.f32.xlu0 %v871
        %v978 = vpop.xlane.xlu0 %977
        %979 = vadd.xlane.f32.xlu0 %v872
        %v980 = vpop.xlane.xlu0 %979
        %981 = vadd.xlane.f32.xlu0 %v873
        %v982 = vpop.xlane.xlu0 %981
        %983 = vadd.xlane.f32.xlu0 %v874
        %v984 = vpop.xlane.xlu0 %983
        %985 = vadd.xlane.f32.xlu0 %v875
        %v986 = vpop.xlane.xlu0 %985
        %987 = vadd.xlane.f32.xlu0 %v876
        %v988 = vpop.xlane.xlu0 %987
        %989 = vadd.xlane.f32.xlu0 %v877
        %v990 = vpop.xlane.xlu0 %989
        %991 = vadd.xlane.f32.xlu0 %v878
        %v992 = vpop.xlane.xlu0 %991
        %993 = vadd.xlane.f32.xlu0 %v879
        %v994 = vpop.xlane.xlu0 %993
        %995 = vadd.xlane.f32.xlu0 %v880
        %v996 = vpop.xlane.xlu0 %995
        %997 = vadd.xlane.f32.xlu0 %v881
        %v998 = vpop.xlane.xlu0 %997
        %999 = vadd.xlane.f32.xlu0 %v882
        %v1000 = vpop.xlane.xlu0 %999
        %1001 = vadd.xlane.f32.xlu0 %v883
        %v1002 = vpop.xlane.xlu0 %1001
        %1003 = vadd.xlane.f32.xlu0 %v884
        %v1004 = vpop.xlane.xlu0 %1003
        %1005 = vadd.xlane.f32.xlu0 %v885
        %v1006 = vpop.xlane.xlu0 %1005
        %1007 = vadd.xlane.f32.xlu0 %v886
        %v1008 = vpop.xlane.xlu0 %1007
        %1009 = vadd.xlane.f32.xlu0 %v887
        %v1010 = vpop.xlane.xlu0 %1009
        %1011 = vadd.xlane.f32.xlu0 %v888
        %v1012 = vpop.xlane.xlu0 %1011
        %1013 = vadd.xlane.f32.xlu0 %v889
        %v1014 = vpop.xlane.xlu0 %1013
        %1015 = vadd.xlane.f32.xlu0 %v890
        %v1016 = vpop.xlane.xlu0 %1015
        %1017 = vadd.xlane.f32.xlu0 %v891
        %v1018 = vpop.xlane.xlu0 %1017
        %1019 = vadd.xlane.f32.xlu0 %v892
        %v1020 = vpop.xlane.xlu0 %1019
        %v1021 = vrsqrt.pop %v894
        %v1022 = vmul.f32 %v894, %v1021
        %vm1023 = vcmp.eq.f32.partialorder %v894, inf
        %v1024 = vsel %vm1023, %v894, %v1022
        %vm1025 = vcmp.eq.f32.partialorder %v894, 0.0
        %v1026 = vand.u32 %v894, 2147483648
        %v1027 = vsel %vm1025, %v1026, %v1024
        %v1028 = vrsqrt.pop %v896
        %v1029 = vmul.f32 %v896, %v1028
        %vm1030 = vcmp.eq.f32.partialorder %v896, inf
        %v1031 = vsel %vm1030, %v896, %v1029
        %vm1032 = vcmp.eq.f32.partialorder %v896, 0.0
        %v1033 = vand.u32 %v896, 2147483648
        %v1034 = vsel %vm1032, %v1033, %v1031
        %v1035 = vrsqrt.pop %v898
        %v1036 = vmul.f32 %v898, %v1035
        %vm1037 = vcmp.eq.f32.partialorder %v898, inf
        %v1038 = vsel %vm1037, %v898, %v1036
        %vm1039 = vcmp.eq.f32.partialorder %v898, 0.0
        %v1040 = vand.u32 %v898, 2147483648
        %v1041 = vsel %vm1039, %v1040, %v1038
        %v1042 = vrsqrt.pop %v900
        %v1043 = vmul.f32 %v900, %v1042
        %vm1044 = vcmp.eq.f32.partialorder %v900, inf
        %v1045 = vsel %vm1044, %v900, %v1043
        %vm1046 = vcmp.eq.f32.partialorder %v900, 0.0
        %v1047 = vand.u32 %v900, 2147483648
        %v1048 = vsel %vm1046, %v1047, %v1045
        %v1049 = vrsqrt.pop %v902
        %v1050 = vmul.f32 %v902, %v1049
        %vm1051 = vcmp.eq.f32.partialorder %v902, inf
        %v1052 = vsel %vm1051, %v902, %v1050
        %vm1053 = vcmp.eq.f32.partialorder %v902, 0.0
        %v1054 = vand.u32 %v902, 2147483648
        %v1055 = vsel %vm1053, %v1054, %v1052
        %v1056 = vrsqrt.pop %v904
        %v1057 = vmul.f32 %v904, %v1056
        %vm1058 = vcmp.eq.f32.partialorder %v904, inf
        %v1059 = vsel %vm1058, %v904, %v1057
        %vm1060 = vcmp.eq.f32.partialorder %v904, 0.0
        %v1061 = vand.u32 %v904, 2147483648
        %v1062 = vsel %vm1060, %v1061, %v1059
        %v1063 = vrsqrt.pop %v906
        %v1064 = vmul.f32 %v906, %v1063
        %vm1065 = vcmp.eq.f32.partialorder %v906, inf
        %v1066 = vsel %vm1065, %v906, %v1064
        %vm1067 = vcmp.eq.f32.partialorder %v906, 0.0
        %v1068 = vand.u32 %v906, 2147483648
        %v1069 = vsel %vm1067, %v1068, %v1066
        %v1070 = vrsqrt.pop %v908
        %v1071 = vmul.f32 %v908, %v1070
        %vm1072 = vcmp.eq.f32.partialorder %v908, inf
        %v1073 = vsel %vm1072, %v908, %v1071
        %vm1074 = vcmp.eq.f32.partialorder %v908, 0.0
        %v1075 = vand.u32 %v908, 2147483648
        %v1076 = vsel %vm1074, %v1075, %v1073
        %v1077 = vrsqrt.pop %v910
        %v1078 = vmul.f32 %v910, %v1077
        %vm1079 = vcmp.eq.f32.partialorder %v910, inf
        %v1080 = vsel %vm1079, %v910, %v1078
        %vm1081 = vcmp.eq.f32.partialorder %v910, 0.0
        %v1082 = vand.u32 %v910, 2147483648
        %v1083 = vsel %vm1081, %v1082, %v1080
        %v1084 = vrsqrt.pop %v912
        %v1085 = vmul.f32 %v912, %v1084
        %vm1086 = vcmp.eq.f32.partialorder %v912, inf
        %v1087 = vsel %vm1086, %v912, %v1085
        %vm1088 = vcmp.eq.f32.partialorder %v912, 0.0
        %v1089 = vand.u32 %v912, 2147483648
        %v1090 = vsel %vm1088, %v1089, %v1087
        %v1091 = vrsqrt.pop %v914
        %v1092 = vmul.f32 %v914, %v1091
        %vm1093 = vcmp.eq.f32.partialorder %v914, inf
        %v1094 = vsel %vm1093, %v914, %v1092
        %vm1095 = vcmp.eq.f32.partialorder %v914, 0.0
        %v1096 = vand.u32 %v914, 2147483648
        %v1097 = vsel %vm1095, %v1096, %v1094
        %v1098 = vrsqrt.pop %v916
        %v1099 = vmul.f32 %v916, %v1098
        %vm1100 = vcmp.eq.f32.partialorder %v916, inf
        %v1101 = vsel %vm1100, %v916, %v1099
        %vm1102 = vcmp.eq.f32.partialorder %v916, 0.0
        %v1103 = vand.u32 %v916, 2147483648
        %v1104 = vsel %vm1102, %v1103, %v1101
        %v1105 = vrsqrt.pop %v918
        %v1106 = vmul.f32 %v918, %v1105
        %vm1107 = vcmp.eq.f32.partialorder %v918, inf
        %v1108 = vsel %vm1107, %v918, %v1106
        %vm1109 = vcmp.eq.f32.partialorder %v918, 0.0
        %v1110 = vand.u32 %v918, 2147483648
        %v1111 = vsel %vm1109, %v1110, %v1108
        %v1112 = vrsqrt.pop %v920
        %v1113 = vmul.f32 %v920, %v1112
        %vm1114 = vcmp.eq.f32.partialorder %v920, inf
        %v1115 = vsel %vm1114, %v920, %v1113
        %vm1116 = vcmp.eq.f32.partialorder %v920, 0.0
        %v1117 = vand.u32 %v920, 2147483648
        %v1118 = vsel %vm1116, %v1117, %v1115
        %v1119 = vrsqrt.pop %v922
        %v1120 = vmul.f32 %v922, %v1119
        %vm1121 = vcmp.eq.f32.partialorder %v922, inf
        %v1122 = vsel %vm1121, %v922, %v1120
        %vm1123 = vcmp.eq.f32.partialorder %v922, 0.0
        %v1124 = vand.u32 %v922, 2147483648
        %v1125 = vsel %vm1123, %v1124, %v1122
        %v1126 = vrsqrt.pop %v924
        %v1127 = vmul.f32 %v924, %v1126
        %vm1128 = vcmp.eq.f32.partialorder %v924, inf
        %v1129 = vsel %vm1128, %v924, %v1127
        %vm1130 = vcmp.eq.f32.partialorder %v924, 0.0
        %v1131 = vand.u32 %v924, 2147483648
        %v1132 = vsel %vm1130, %v1131, %v1129
        %v1133 = vrsqrt.pop %v926
        %v1134 = vmul.f32 %v926, %v1133
        %vm1135 = vcmp.eq.f32.partialorder %v926, inf
        %v1136 = vsel %vm1135, %v926, %v1134
        %vm1137 = vcmp.eq.f32.partialorder %v926, 0.0
        %v1138 = vand.u32 %v926, 2147483648
        %v1139 = vsel %vm1137, %v1138, %v1136
        %v1140 = vrsqrt.pop %v928
        %v1141 = vmul.f32 %v928, %v1140
        %vm1142 = vcmp.eq.f32.partialorder %v928, inf
        %v1143 = vsel %vm1142, %v928, %v1141
        %vm1144 = vcmp.eq.f32.partialorder %v928, 0.0
        %v1145 = vand.u32 %v928, 2147483648
        %v1146 = vsel %vm1144, %v1145, %v1143
        %v1147 = vrsqrt.pop %v930
        %v1148 = vmul.f32 %v930, %v1147
        %vm1149 = vcmp.eq.f32.partialorder %v930, inf
        %v1150 = vsel %vm1149, %v930, %v1148
        %vm1151 = vcmp.eq.f32.partialorder %v930, 0.0
        %v1152 = vand.u32 %v930, 2147483648
        %v1153 = vsel %vm1151, %v1152, %v1150
        %v1154 = vrsqrt.pop %v932
        %v1155 = vmul.f32 %v932, %v1154
        %vm1156 = vcmp.eq.f32.partialorder %v932, inf
        %v1157 = vsel %vm1156, %v932, %v1155
        %vm1158 = vcmp.eq.f32.partialorder %v932, 0.0
        %v1159 = vand.u32 %v932, 2147483648
        %v1160 = vsel %vm1158, %v1159, %v1157
        %v1161 = vrsqrt.pop %v934
        %v1162 = vmul.f32 %v934, %v1161
        %vm1163 = vcmp.eq.f32.partialorder %v934, inf
        %v1164 = vsel %vm1163, %v934, %v1162
        %vm1165 = vcmp.eq.f32.partialorder %v934, 0.0
        %v1166 = vand.u32 %v934, 2147483648
        %v1167 = vsel %vm1165, %v1166, %v1164
        %v1168 = vrsqrt.pop %v936
        %v1169 = vmul.f32 %v936, %v1168
        %vm1170 = vcmp.eq.f32.partialorder %v936, inf
        %v1171 = vsel %vm1170, %v936, %v1169
        %vm1172 = vcmp.eq.f32.partialorder %v936, 0.0
        %v1173 = vand.u32 %v936, 2147483648
        %v1174 = vsel %vm1172, %v1173, %v1171
        %v1175 = vrsqrt.pop %v938
        %v1176 = vmul.f32 %v938, %v1175
        %vm1177 = vcmp.eq.f32.partialorder %v938, inf
        %v1178 = vsel %vm1177, %v938, %v1176
        %vm1179 = vcmp.eq.f32.partialorder %v938, 0.0
        %v1180 = vand.u32 %v938, 2147483648
        %v1181 = vsel %vm1179, %v1180, %v1178
        %v1182 = vrsqrt.pop %v940
        %v1183 = vmul.f32 %v940, %v1182
        %vm1184 = vcmp.eq.f32.partialorder %v940, inf
        %v1185 = vsel %vm1184, %v940, %v1183
        %vm1186 = vcmp.eq.f32.partialorder %v940, 0.0
        %v1187 = vand.u32 %v940, 2147483648
        %v1188 = vsel %vm1186, %v1187, %v1185
        %v1189 = vrsqrt.pop %v942
        %v1190 = vmul.f32 %v942, %v1189
        %vm1191 = vcmp.eq.f32.partialorder %v942, inf
        %v1192 = vsel %vm1191, %v942, %v1190
        %vm1193 = vcmp.eq.f32.partialorder %v942, 0.0
        %v1194 = vand.u32 %v942, 2147483648
        %v1195 = vsel %vm1193, %v1194, %v1192
        %v1196 = vrsqrt.pop %v944
        %v1197 = vmul.f32 %v944, %v1196
        %vm1198 = vcmp.eq.f32.partialorder %v944, inf
        %v1199 = vsel %vm1198, %v944, %v1197
        %vm1200 = vcmp.eq.f32.partialorder %v944, 0.0
        %v1201 = vand.u32 %v944, 2147483648
        %v1202 = vsel %vm1200, %v1201, %v1199
        %v1203 = vrsqrt.pop %v946
        %v1204 = vmul.f32 %v946, %v1203
        %vm1205 = vcmp.eq.f32.partialorder %v946, inf
        %v1206 = vsel %vm1205, %v946, %v1204
        %vm1207 = vcmp.eq.f32.partialorder %v946, 0.0
        %v1208 = vand.u32 %v946, 2147483648
        %v1209 = vsel %vm1207, %v1208, %v1206
        %v1210 = vrsqrt.pop %v948
        %v1211 = vmul.f32 %v948, %v1210
        %vm1212 = vcmp.eq.f32.partialorder %v948, inf
        %v1213 = vsel %vm1212, %v948, %v1211
        %vm1214 = vcmp.eq.f32.partialorder %v948, 0.0
        %v1215 = vand.u32 %v948, 2147483648
        %v1216 = vsel %vm1214, %v1215, %v1213
        %v1217 = vrsqrt.pop %v950
        %v1218 = vmul.f32 %v950, %v1217
        %vm1219 = vcmp.eq.f32.partialorder %v950, inf
        %v1220 = vsel %vm1219, %v950, %v1218
        %vm1221 = vcmp.eq.f32.partialorder %v950, 0.0
        %v1222 = vand.u32 %v950, 2147483648
        %v1223 = vsel %vm1221, %v1222, %v1220
        %v1224 = vrsqrt.pop %v952
        %v1225 = vmul.f32 %v952, %v1224
        %vm1226 = vcmp.eq.f32.partialorder %v952, inf
        %v1227 = vsel %vm1226, %v952, %v1225
        %vm1228 = vcmp.eq.f32.partialorder %v952, 0.0
        %v1229 = vand.u32 %v952, 2147483648
        %v1230 = vsel %vm1228, %v1229, %v1227
        %v1231 = vrsqrt.pop %v954
        %v1232 = vmul.f32 %v954, %v1231
        %vm1233 = vcmp.eq.f32.partialorder %v954, inf
        %v1234 = vsel %vm1233, %v954, %v1232
        %vm1235 = vcmp.eq.f32.partialorder %v954, 0.0
        %v1236 = vand.u32 %v954, 2147483648
        %v1237 = vsel %vm1235, %v1236, %v1234
        %v1238 = vrsqrt.pop %v956
        %v1239 = vmul.f32 %v956, %v1238
        %vm1240 = vcmp.eq.f32.partialorder %v956, inf
        %v1241 = vsel %vm1240, %v956, %v1239
        %vm1242 = vcmp.eq.f32.partialorder %v956, 0.0
        %v1243 = vand.u32 %v956, 2147483648
        %v1244 = vsel %vm1242, %v1243, %v1241
        %v1245 = vrsqrt.pop %v958
        %v1246 = vmul.f32 %v958, %v1245
        %vm1247 = vcmp.eq.f32.partialorder %v958, inf
        %v1248 = vsel %vm1247, %v958, %v1246
        %vm1249 = vcmp.eq.f32.partialorder %v958, 0.0
        %v1250 = vand.u32 %v958, 2147483648
        %v1251 = vsel %vm1249, %v1250, %v1248
        %v1252 = vrsqrt.pop %v960
        %v1253 = vmul.f32 %v960, %v1252
        %vm1254 = vcmp.eq.f32.partialorder %v960, inf
        %v1255 = vsel %vm1254, %v960, %v1253
        %vm1256 = vcmp.eq.f32.partialorder %v960, 0.0
        %v1257 = vand.u32 %v960, 2147483648
        %v1258 = vsel %vm1256, %v1257, %v1255
        %v1259 = vrsqrt.pop %v962
        %v1260 = vmul.f32 %v962, %v1259
        %vm1261 = vcmp.eq.f32.partialorder %v962, inf
        %v1262 = vsel %vm1261, %v962, %v1260
        %vm1263 = vcmp.eq.f32.partialorder %v962, 0.0
        %v1264 = vand.u32 %v962, 2147483648
        %v1265 = vsel %vm1263, %v1264, %v1262
        %v1266 = vrsqrt.pop %v964
        %v1267 = vmul.f32 %v964, %v1266
        %vm1268 = vcmp.eq.f32.partialorder %v964, inf
        %v1269 = vsel %vm1268, %v964, %v1267
        %vm1270 = vcmp.eq.f32.partialorder %v964, 0.0
        %v1271 = vand.u32 %v964, 2147483648
        %v1272 = vsel %vm1270, %v1271, %v1269
        %v1273 = vrsqrt.pop %v966
        %v1274 = vmul.f32 %v966, %v1273
        %vm1275 = vcmp.eq.f32.partialorder %v966, inf
        %v1276 = vsel %vm1275, %v966, %v1274
        %vm1277 = vcmp.eq.f32.partialorder %v966, 0.0
        %v1278 = vand.u32 %v966, 2147483648
        %v1279 = vsel %vm1277, %v1278, %v1276
        %v1280 = vrsqrt.pop %v968
        %v1281 = vmul.f32 %v968, %v1280
        %vm1282 = vcmp.eq.f32.partialorder %v968, inf
        %v1283 = vsel %vm1282, %v968, %v1281
        %vm1284 = vcmp.eq.f32.partialorder %v968, 0.0
        %v1285 = vand.u32 %v968, 2147483648
        %v1286 = vsel %vm1284, %v1285, %v1283
        %v1287 = vrsqrt.pop %v970
        %v1288 = vmul.f32 %v970, %v1287
        %vm1289 = vcmp.eq.f32.partialorder %v970, inf
        %v1290 = vsel %vm1289, %v970, %v1288
        %vm1291 = vcmp.eq.f32.partialorder %v970, 0.0
        %v1292 = vand.u32 %v970, 2147483648
        %v1293 = vsel %vm1291, %v1292, %v1290
        %v1294 = vrsqrt.pop %v972
        %v1295 = vmul.f32 %v972, %v1294
        %vm1296 = vcmp.eq.f32.partialorder %v972, inf
        %v1297 = vsel %vm1296, %v972, %v1295
        %vm1298 = vcmp.eq.f32.partialorder %v972, 0.0
        %v1299 = vand.u32 %v972, 2147483648
        %v1300 = vsel %vm1298, %v1299, %v1297
        %v1301 = vrsqrt.pop %v974
        %v1302 = vmul.f32 %v974, %v1301
        %vm1303 = vcmp.eq.f32.partialorder %v974, inf
        %v1304 = vsel %vm1303, %v974, %v1302
        %vm1305 = vcmp.eq.f32.partialorder %v974, 0.0
        %v1306 = vand.u32 %v974, 2147483648
        %v1307 = vsel %vm1305, %v1306, %v1304
        %v1308 = vrsqrt.pop %v976
        %v1309 = vmul.f32 %v976, %v1308
        %vm1310 = vcmp.eq.f32.partialorder %v976, inf
        %v1311 = vsel %vm1310, %v976, %v1309
        %vm1312 = vcmp.eq.f32.partialorder %v976, 0.0
        %v1313 = vand.u32 %v976, 2147483648
        %v1314 = vsel %vm1312, %v1313, %v1311
        %v1315 = vrsqrt.pop %v978
        %v1316 = vmul.f32 %v978, %v1315
        %vm1317 = vcmp.eq.f32.partialorder %v978, inf
        %v1318 = vsel %vm1317, %v978, %v1316
        %vm1319 = vcmp.eq.f32.partialorder %v978, 0.0
        %v1320 = vand.u32 %v978, 2147483648
        %v1321 = vsel %vm1319, %v1320, %v1318
        %v1322 = vrsqrt.pop %v980
        %v1323 = vmul.f32 %v980, %v1322
        %vm1324 = vcmp.eq.f32.partialorder %v980, inf
        %v1325 = vsel %vm1324, %v980, %v1323
        %vm1326 = vcmp.eq.f32.partialorder %v980, 0.0
        %v1327 = vand.u32 %v980, 2147483648
        %v1328 = vsel %vm1326, %v1327, %v1325
        %v1329 = vrsqrt.pop %v982
        %v1330 = vmul.f32 %v982, %v1329
        %vm1331 = vcmp.eq.f32.partialorder %v982, inf
        %v1332 = vsel %vm1331, %v982, %v1330
        %vm1333 = vcmp.eq.f32.partialorder %v982, 0.0
        %v1334 = vand.u32 %v982, 2147483648
        %v1335 = vsel %vm1333, %v1334, %v1332
        %v1336 = vrsqrt.pop %v984
        %v1337 = vmul.f32 %v984, %v1336
        %vm1338 = vcmp.eq.f32.partialorder %v984, inf
        %v1339 = vsel %vm1338, %v984, %v1337
        %vm1340 = vcmp.eq.f32.partialorder %v984, 0.0
        %v1341 = vand.u32 %v984, 2147483648
        %v1342 = vsel %vm1340, %v1341, %v1339
        %v1343 = vrsqrt.pop %v986
        %v1344 = vmul.f32 %v986, %v1343
        %vm1345 = vcmp.eq.f32.partialorder %v986, inf
        %v1346 = vsel %vm1345, %v986, %v1344
        %vm1347 = vcmp.eq.f32.partialorder %v986, 0.0
        %v1348 = vand.u32 %v986, 2147483648
        %v1349 = vsel %vm1347, %v1348, %v1346
        %v1350 = vrsqrt.pop %v988
        %v1351 = vmul.f32 %v988, %v1350
        %vm1352 = vcmp.eq.f32.partialorder %v988, inf
        %v1353 = vsel %vm1352, %v988, %v1351
        %vm1354 = vcmp.eq.f32.partialorder %v988, 0.0
        %v1355 = vand.u32 %v988, 2147483648
        %v1356 = vsel %vm1354, %v1355, %v1353
        %v1357 = vrsqrt.pop %v990
        %v1358 = vmul.f32 %v990, %v1357
        %vm1359 = vcmp.eq.f32.partialorder %v990, inf
        %v1360 = vsel %vm1359, %v990, %v1358
        %vm1361 = vcmp.eq.f32.partialorder %v990, 0.0
        %v1362 = vand.u32 %v990, 2147483648
        %v1363 = vsel %vm1361, %v1362, %v1360
        %v1364 = vrsqrt.pop %v992
        %v1365 = vmul.f32 %v992, %v1364
        %vm1366 = vcmp.eq.f32.partialorder %v992, inf
        %v1367 = vsel %vm1366, %v992, %v1365
        %vm1368 = vcmp.eq.f32.partialorder %v992, 0.0
        %v1369 = vand.u32 %v992, 2147483648
        %v1370 = vsel %vm1368, %v1369, %v1367
        %v1371 = vrsqrt.pop %v994
        %v1372 = vmul.f32 %v994, %v1371
        %vm1373 = vcmp.eq.f32.partialorder %v994, inf
        %v1374 = vsel %vm1373, %v994, %v1372
        %vm1375 = vcmp.eq.f32.partialorder %v994, 0.0
        %v1376 = vand.u32 %v994, 2147483648
        %v1377 = vsel %vm1375, %v1376, %v1374
        %v1378 = vrsqrt.pop %v996
        %v1379 = vmul.f32 %v996, %v1378
        %vm1380 = vcmp.eq.f32.partialorder %v996, inf
        %v1381 = vsel %vm1380, %v996, %v1379
        %vm1382 = vcmp.eq.f32.partialorder %v996, 0.0
        %v1383 = vand.u32 %v996, 2147483648
        %v1384 = vsel %vm1382, %v1383, %v1381
        %v1385 = vrsqrt.pop %v998
        %v1386 = vmul.f32 %v998, %v1385
        %vm1387 = vcmp.eq.f32.partialorder %v998, inf
        %v1388 = vsel %vm1387, %v998, %v1386
        %vm1389 = vcmp.eq.f32.partialorder %v998, 0.0
        %v1390 = vand.u32 %v998, 2147483648
        %v1391 = vsel %vm1389, %v1390, %v1388
        %v1392 = vrsqrt.pop %v1000
        %v1393 = vmul.f32 %v1000, %v1392
        %vm1394 = vcmp.eq.f32.partialorder %v1000, inf
        %v1395 = vsel %vm1394, %v1000, %v1393
        %vm1396 = vcmp.eq.f32.partialorder %v1000, 0.0
        %v1397 = vand.u32 %v1000, 2147483648
        %v1398 = vsel %vm1396, %v1397, %v1395
        %v1399 = vrsqrt.pop %v1002
        %v1400 = vmul.f32 %v1002, %v1399
        %vm1401 = vcmp.eq.f32.partialorder %v1002, inf
        %v1402 = vsel %vm1401, %v1002, %v1400
        %vm1403 = vcmp.eq.f32.partialorder %v1002, 0.0
        %v1404 = vand.u32 %v1002, 2147483648
        %v1405 = vsel %vm1403, %v1404, %v1402
        %v1406 = vrsqrt.pop %v1004
        %v1407 = vmul.f32 %v1004, %v1406
        %vm1408 = vcmp.eq.f32.partialorder %v1004, inf
        %v1409 = vsel %vm1408, %v1004, %v1407
        %vm1410 = vcmp.eq.f32.partialorder %v1004, 0.0
        %v1411 = vand.u32 %v1004, 2147483648
        %v1412 = vsel %vm1410, %v1411, %v1409
        %v1413 = vrsqrt.pop %v1006
        %v1414 = vmul.f32 %v1006, %v1413
        %vm1415 = vcmp.eq.f32.partialorder %v1006, inf
        %v1416 = vsel %vm1415, %v1006, %v1414
        %vm1417 = vcmp.eq.f32.partialorder %v1006, 0.0
        %v1418 = vand.u32 %v1006, 2147483648
        %v1419 = vsel %vm1417, %v1418, %v1416
        %v1420 = vrsqrt.pop %v1008
        %v1421 = vmul.f32 %v1008, %v1420
        %vm1422 = vcmp.eq.f32.partialorder %v1008, inf
        %v1423 = vsel %vm1422, %v1008, %v1421
        %vm1424 = vcmp.eq.f32.partialorder %v1008, 0.0
        %v1425 = vand.u32 %v1008, 2147483648
        %v1426 = vsel %vm1424, %v1425, %v1423
        %v1427 = vrsqrt.pop %v1010
        %v1428 = vmul.f32 %v1010, %v1427
        %vm1429 = vcmp.eq.f32.partialorder %v1010, inf
        %v1430 = vsel %vm1429, %v1010, %v1428
        %vm1431 = vcmp.eq.f32.partialorder %v1010, 0.0
        %v1432 = vand.u32 %v1010, 2147483648
        %v1433 = vsel %vm1431, %v1432, %v1430
        %v1434 = vrsqrt.pop %v1012
        %v1435 = vmul.f32 %v1012, %v1434
        %vm1436 = vcmp.eq.f32.partialorder %v1012, inf
        %v1437 = vsel %vm1436, %v1012, %v1435
        %vm1438 = vcmp.eq.f32.partialorder %v1012, 0.0
        %v1439 = vand.u32 %v1012, 2147483648
        %v1440 = vsel %vm1438, %v1439, %v1437
        %v1441 = vrsqrt.pop %v1014
        %v1442 = vmul.f32 %v1014, %v1441
        %vm1443 = vcmp.eq.f32.partialorder %v1014, inf
        %v1444 = vsel %vm1443, %v1014, %v1442
        %vm1445 = vcmp.eq.f32.partialorder %v1014, 0.0
        %v1446 = vand.u32 %v1014, 2147483648
        %v1447 = vsel %vm1445, %v1446, %v1444
        %v1448 = vrsqrt.pop %v1016
        %v1449 = vmul.f32 %v1016, %v1448
        %vm1450 = vcmp.eq.f32.partialorder %v1016, inf
        %v1451 = vsel %vm1450, %v1016, %v1449
        %vm1452 = vcmp.eq.f32.partialorder %v1016, 0.0
        %v1453 = vand.u32 %v1016, 2147483648
        %v1454 = vsel %vm1452, %v1453, %v1451
        %v1455 = vrsqrt.pop %v1018
        %v1456 = vmul.f32 %v1018, %v1455
        %vm1457 = vcmp.eq.f32.partialorder %v1018, inf
        %v1458 = vsel %vm1457, %v1018, %v1456
        %vm1459 = vcmp.eq.f32.partialorder %v1018, 0.0
        %v1460 = vand.u32 %v1018, 2147483648
        %v1461 = vsel %vm1459, %v1460, %v1458
        %v1462 = vrsqrt.pop %v1020
        %v1463 = vmul.f32 %v1020, %v1462
        %vm1464 = vcmp.eq.f32.partialorder %v1020, inf
        %v1465 = vsel %vm1464, %v1020, %v1463
        %vm1466 = vcmp.eq.f32.partialorder %v1020, 0.0
        %v1467 = vand.u32 %v1020, 2147483648
        %v1468 = vsel %vm1466, %v1467, %v1465
        %v1469 = vlaneseq
        %v1470 = vand.u32 %v1469, 127
        %v1471 = vlaneseq
        %v1472 = vshrl.u32 %v1471, 7
        %s1473 = smul.u32 %s26, 4
        %s1474 = sld [smem:[#allocation3 + %s1473]]
        %vm1475 = vcmp.eq.s32.totalorder %v1472, 0
        %v1476 = vstv %s1474
        %v1477 = vsel %vm1475, %v1476, 0
        %s1478 = sadd.s32 %s1473, 1
        %s1479 = sld [smem:[#allocation3 + %s1478]]
        %vm1480 = vcmp.eq.s32.totalorder %v1472, 1
        %v1481 = vstv %s1479
        %v1482 = vsel %vm1480, %v1481, %v1477
        %s1483 = sadd.s32 %s1473, 2
        %s1484 = sld [smem:[#allocation3 + %s1483]]
        %vm1485 = vcmp.eq.s32.totalorder %v1472, 2
        %v1486 = vstv %s1484
        %v1487 = vsel %vm1485, %v1486, %v1482
        %s1488 = sadd.s32 %s1473, 3
        %s1489 = sld [smem:[#allocation3 + %s1488]]
        %vm1490 = vcmp.eq.s32.totalorder %v1472, 3
        %v1491 = vstv %s1489
        %v1492 = vsel %vm1490, %v1491, %v1487
        %vm1493 = vcmp.lt.s32.totalorder %v1470, %v1492
        %v1558 = vlaneseq
        %v1559 = vshrl.u32 %v1558, 7
        %v1560 = vsub.s32 %v1470, %v1559
        %v1561 = vrot.slane %v1027, %v1560
        %v1562 = vadd.s32 %v1470, 4294967288
        %v1563 = vlaneseq
        %v1564 = vshrl.u32 %v1563, 7
        %v1565 = vsub.s32 %v1562, %v1564
        %v1566 = vrot.slane %v1034, %v1565
        %vm1567 = vcmask 130112
        %v1568 = vsel %vm1567, %v1566, %v1561
        %v1569 = vadd.s32 %v1470, 4294967280
        %v1570 = vlaneseq
        %v1571 = vshrl.u32 %v1570, 7
        %v1572 = vsub.s32 %v1569, %v1571
        %v1573 = vrot.slane %v1041, %v1572
        %vm1574 = vcmask 195712
        %v1575 = vsel %vm1574, %v1573, %v1568
        %v1576 = vadd.s32 %v1470, 4294967272
        %v1577 = vlaneseq
        %v1578 = vshrl.u32 %v1577, 7
        %v1579 = vsub.s32 %v1576, %v1578
        %v1580 = vrot.slane %v1048, %v1579
        %vm1581 = vcmask 261312
        %v1582 = vsel %vm1581, %v1580, %v1575
        %v1583 = vadd.s32 %v1470, 4294967264
        %v1584 = vlaneseq
        %v1585 = vshrl.u32 %v1584, 7
        %v1586 = vsub.s32 %v1583, %v1585
        %v1587 = vrot.slane %v1055, %v1586
        %vm1588 = vcmask 326912
        %v1589 = vsel %vm1588, %v1587, %v1582
        %v1590 = vadd.s32 %v1470, 4294967256
        %v1591 = vlaneseq
        %v1592 = vshrl.u32 %v1591, 7
        %v1593 = vsub.s32 %v1590, %v1592
        %v1594 = vrot.slane %v1062, %v1593
        %vm1595 = vcmask 392512
        %v1596 = vsel %vm1595, %v1594, %v1589
        %v1597 = vadd.s32 %v1470, 4294967248
        %v1598 = vlaneseq
        %v1599 = vshrl.u32 %v1598, 7
        %v1600 = vsub.s32 %v1597, %v1599
        %v1601 = vrot.slane %v1069, %v1600
        %vm1602 = vcmask 458112
        %v1603 = vsel %vm1602, %v1601, %v1596
        %v1604 = vadd.s32 %v1470, 4294967240
        %v1605 = vlaneseq
        %v1606 = vshrl.u32 %v1605, 7
        %v1607 = vsub.s32 %v1604, %v1606
        %v1608 = vrot.slane %v1076, %v1607
        %vm1609 = vcmask 523712
        %v1610 = vsel %vm1609, %v1608, %v1603
        %v1611 = vadd.s32 %v1470, 4294967232
        %v1612 = vlaneseq
        %v1613 = vshrl.u32 %v1612, 7
        %v1614 = vsub.s32 %v1611, %v1613
        %v1615 = vrot.slane %v1083, %v1614
        %vm1616 = vcmask 589312
        %v1617 = vsel %vm1616, %v1615, %v1610
        %v1618 = vadd.s32 %v1470, 4294967224
        %v1619 = vlaneseq
        %v1620 = vshrl.u32 %v1619, 7
        %v1621 = vsub.s32 %v1618, %v1620
        %v1622 = vrot.slane %v1090, %v1621
        %vm1623 = vcmask 654912
        %v1624 = vsel %vm1623, %v1622, %v1617
        %v1625 = vadd.s32 %v1470, 4294967216
        %v1626 = vlaneseq
        %v1627 = vshrl.u32 %v1626, 7
        %v1628 = vsub.s32 %v1625, %v1627
        %v1629 = vrot.slane %v1097, %v1628
        %vm1630 = vcmask 720512
        %v1631 = vsel %vm1630, %v1629, %v1624
        %v1632 = vadd.s32 %v1470, 4294967208
        %v1633 = vlaneseq
        %v1634 = vshrl.u32 %v1633, 7
        %v1635 = vsub.s32 %v1632, %v1634
        %v1636 = vrot.slane %v1104, %v1635
        %vm1637 = vcmask 786112
        %v1638 = vsel %vm1637, %v1636, %v1631
        %v1639 = vadd.s32 %v1470, 4294967200
        %v1640 = vlaneseq
        %v1641 = vshrl.u32 %v1640, 7
        %v1642 = vsub.s32 %v1639, %v1641
        %v1643 = vrot.slane %v1111, %v1642
        %vm1644 = vcmask 851712
        %v1645 = vsel %vm1644, %v1643, %v1638
        %v1646 = vadd.s32 %v1470, 4294967192
        %v1647 = vlaneseq
        %v1648 = vshrl.u32 %v1647, 7
        %v1649 = vsub.s32 %v1646, %v1648
        %v1650 = vrot.slane %v1118, %v1649
        %vm1651 = vcmask 917312
        %v1652 = vsel %vm1651, %v1650, %v1645
        %v1653 = vadd.s32 %v1470, 4294967184
        %v1654 = vlaneseq
        %v1655 = vshrl.u32 %v1654, 7
        %v1656 = vsub.s32 %v1653, %v1655
        %v1657 = vrot.slane %v1125, %v1656
        %vm1658 = vcmask 982912
        %v1659 = vsel %vm1658, %v1657, %v1652
        %v1660 = vadd.s32 %v1470, 4294967176
        %v1661 = vlaneseq
        %v1662 = vshrl.u32 %v1661, 7
        %v1663 = vsub.s32 %v1660, %v1662
        %v1664 = vrot.slane %v1132, %v1663
        %vm1665 = vcmask 1048512
        %v1666 = vsel %vm1665, %v1664, %v1659
        %v1667 = vlaneseq
        %v1668 = vshrl.u32 %v1667, 7
        %v1669 = vsub.s32 %v1470, %v1668
        %v1670 = vrot.slane %v1139, %v1669
        %v1671 = vlaneseq
        %v1672 = vshrl.u32 %v1671, 7
        %v1673 = vsub.s32 %v1562, %v1672
        %v1674 = vrot.slane %v1146, %v1673
        %v1675 = vsel %vm1567, %v1674, %v1670
        %v1676 = vlaneseq
        %v1677 = vshrl.u32 %v1676, 7
        %v1678 = vsub.s32 %v1569, %v1677
        %v1679 = vrot.slane %v1153, %v1678
        %v1680 = vsel %vm1574, %v1679, %v1675
        %v1681 = vlaneseq
        %v1682 = vshrl.u32 %v1681, 7
        %v1683 = vsub.s32 %v1576, %v1682
        %v1684 = vrot.slane %v1160, %v1683
        %v1685 = vsel %vm1581, %v1684, %v1680
        %v1686 = vlaneseq
        %v1687 = vshrl.u32 %v1686, 7
        %v1688 = vsub.s32 %v1583, %v1687
        %v1689 = vrot.slane %v1167, %v1688
        %v1690 = vsel %vm1588, %v1689, %v1685
        %v1691 = vlaneseq
        %v1692 = vshrl.u32 %v1691, 7
        %v1693 = vsub.s32 %v1590, %v1692
        %v1694 = vrot.slane %v1174, %v1693
        %v1695 = vsel %vm1595, %v1694, %v1690
        %v1696 = vlaneseq
        %v1697 = vshrl.u32 %v1696, 7
        %v1698 = vsub.s32 %v1597, %v1697
        %v1699 = vrot.slane %v1181, %v1698
        %v1700 = vsel %vm1602, %v1699, %v1695
        %v1701 = vlaneseq
        %v1702 = vshrl.u32 %v1701, 7
        %v1703 = vsub.s32 %v1604, %v1702
        %v1704 = vrot.slane %v1188, %v1703
        %v1705 = vsel %vm1609, %v1704, %v1700
        %v1706 = vlaneseq
        %v1707 = vshrl.u32 %v1706, 7
        %v1708 = vsub.s32 %v1611, %v1707
        %v1709 = vrot.slane %v1195, %v1708
        %v1710 = vsel %vm1616, %v1709, %v1705
        %v1711 = vlaneseq
        %v1712 = vshrl.u32 %v1711, 7
        %v1713 = vsub.s32 %v1618, %v1712
        %v1714 = vrot.slane %v1202, %v1713
        %v1715 = vsel %vm1623, %v1714, %v1710
        %v1716 = vlaneseq
        %v1717 = vshrl.u32 %v1716, 7
        %v1718 = vsub.s32 %v1625, %v1717
        %v1719 = vrot.slane %v1209, %v1718
        %v1720 = vsel %vm1630, %v1719, %v1715
        %v1721 = vlaneseq
        %v1722 = vshrl.u32 %v1721, 7
        %v1723 = vsub.s32 %v1632, %v1722
        %v1724 = vrot.slane %v1216, %v1723
        %v1725 = vsel %vm1637, %v1724, %v1720
        %v1726 = vlaneseq
        %v1727 = vshrl.u32 %v1726, 7
        %v1728 = vsub.s32 %v1639, %v1727
        %v1729 = vrot.slane %v1223, %v1728
        %v1730 = vsel %vm1644, %v1729, %v1725
        %v1731 = vlaneseq
        %v1732 = vshrl.u32 %v1731, 7
        %v1733 = vsub.s32 %v1646, %v1732
        %v1734 = vrot.slane %v1230, %v1733
        %v1735 = vsel %vm1651, %v1734, %v1730
        %v1736 = vlaneseq
        %v1737 = vshrl.u32 %v1736, 7
        %v1738 = vsub.s32 %v1653, %v1737
        %v1739 = vrot.slane %v1237, %v1738
        %v1740 = vsel %vm1658, %v1739, %v1735
        %v1741 = vlaneseq
        %v1742 = vshrl.u32 %v1741, 7
        %v1743 = vsub.s32 %v1660, %v1742
        %v1744 = vrot.slane %v1244, %v1743
        %v1745 = vsel %vm1665, %v1744, %v1740
        %v1746 = vlaneseq
        %v1747 = vshrl.u32 %v1746, 7
        %v1748 = vsub.s32 %v1470, %v1747
        %v1749 = vrot.slane %v1251, %v1748
        %v1750 = vlaneseq
        %v1751 = vshrl.u32 %v1750, 7
        %v1752 = vsub.s32 %v1562, %v1751
        %v1753 = vrot.slane %v1258, %v1752
        %v1754 = vsel %vm1567, %v1753, %v1749
        %v1755 = vlaneseq
        %v1756 = vshrl.u32 %v1755, 7
        %v1757 = vsub.s32 %v1569, %v1756
        %v1758 = vrot.slane %v1265, %v1757
        %v1759 = vsel %vm1574, %v1758, %v1754
        %v1760 = vlaneseq
        %v1761 = vshrl.u32 %v1760, 7
        %v1762 = vsub.s32 %v1576, %v1761
        %v1763 = vrot.slane %v1272, %v1762
        %v1764 = vsel %vm1581, %v1763, %v1759
        %v1765 = vlaneseq
        %v1766 = vshrl.u32 %v1765, 7
        %v1767 = vsub.s32 %v1583, %v1766
        %v1768 = vrot.slane %v1279, %v1767
        %v1769 = vsel %vm1588, %v1768, %v1764
        %v1770 = vlaneseq
        %v1771 = vshrl.u32 %v1770, 7
        %v1772 = vsub.s32 %v1590, %v1771
        %v1773 = vrot.slane %v1286, %v1772
        %v1774 = vsel %vm1595, %v1773, %v1769
        %v1775 = vlaneseq
        %v1776 = vshrl.u32 %v1775, 7
        %v1777 = vsub.s32 %v1597, %v1776
        %v1778 = vrot.slane %v1293, %v1777
        %v1779 = vsel %vm1602, %v1778, %v1774
        %v1780 = vlaneseq
        %v1781 = vshrl.u32 %v1780, 7
        %v1782 = vsub.s32 %v1604, %v1781
        %v1783 = vrot.slane %v1300, %v1782
        %v1784 = vsel %vm1609, %v1783, %v1779
        %v1785 = vlaneseq
        %v1786 = vshrl.u32 %v1785, 7
        %v1787 = vsub.s32 %v1611, %v1786
        %v1788 = vrot.slane %v1307, %v1787
        %v1789 = vsel %vm1616, %v1788, %v1784
        %v1790 = vlaneseq
        %v1791 = vshrl.u32 %v1790, 7
        %v1792 = vsub.s32 %v1618, %v1791
        %v1793 = vrot.slane %v1314, %v1792
        %v1794 = vsel %vm1623, %v1793, %v1789
        %v1795 = vlaneseq
        %v1796 = vshrl.u32 %v1795, 7
        %v1797 = vsub.s32 %v1625, %v1796
        %v1798 = vrot.slane %v1321, %v1797
        %v1799 = vsel %vm1630, %v1798, %v1794
        %v1800 = vlaneseq
        %v1801 = vshrl.u32 %v1800, 7
        %v1802 = vsub.s32 %v1632, %v1801
        %v1803 = vrot.slane %v1328, %v1802
        %v1804 = vsel %vm1637, %v1803, %v1799
        %v1805 = vlaneseq
        %v1806 = vshrl.u32 %v1805, 7
        %v1807 = vsub.s32 %v1639, %v1806
        %v1808 = vrot.slane %v1335, %v1807
        %v1809 = vsel %vm1644, %v1808, %v1804
        %v1810 = vlaneseq
        %v1811 = vshrl.u32 %v1810, 7
        %v1812 = vsub.s32 %v1646, %v1811
        %v1813 = vrot.slane %v1342, %v1812
        %v1814 = vsel %vm1651, %v1813, %v1809
        %v1815 = vlaneseq
        %v1816 = vshrl.u32 %v1815, 7
        %v1817 = vsub.s32 %v1653, %v1816
        %v1818 = vrot.slane %v1349, %v1817
        %v1819 = vsel %vm1658, %v1818, %v1814
        %v1820 = vlaneseq
        %v1821 = vshrl.u32 %v1820, 7
        %v1822 = vsub.s32 %v1660, %v1821
        %v1823 = vrot.slane %v1356, %v1822
        %v1824 = vsel %vm1665, %v1823, %v1819
        %v1825 = vlaneseq
        %v1826 = vshrl.u32 %v1825, 7
        %v1827 = vsub.s32 %v1470, %v1826
        %v1828 = vrot.slane %v1363, %v1827
        %v1829 = vlaneseq
        %v1830 = vshrl.u32 %v1829, 7
        %v1831 = vsub.s32 %v1562, %v1830
        %v1832 = vrot.slane %v1370, %v1831
        %v1833 = vsel %vm1567, %v1832, %v1828
        %v1834 = vlaneseq
        %v1835 = vshrl.u32 %v1834, 7
        %v1836 = vsub.s32 %v1569, %v1835
        %v1837 = vrot.slane %v1377, %v1836
        %v1838 = vsel %vm1574, %v1837, %v1833
        %v1839 = vlaneseq
        %v1840 = vshrl.u32 %v1839, 7
        %v1841 = vsub.s32 %v1576, %v1840
        %v1842 = vrot.slane %v1384, %v1841
        %v1843 = vsel %vm1581, %v1842, %v1838
        %v1844 = vlaneseq
        %v1845 = vshrl.u32 %v1844, 7
        %v1846 = vsub.s32 %v1583, %v1845
        %v1847 = vrot.slane %v1391, %v1846
        %v1848 = vsel %vm1588, %v1847, %v1843
        %v1849 = vlaneseq
        %v1850 = vshrl.u32 %v1849, 7
        %v1851 = vsub.s32 %v1590, %v1850
        %v1852 = vrot.slane %v1398, %v1851
        %v1853 = vsel %vm1595, %v1852, %v1848
        %v1854 = vlaneseq
        %v1855 = vshrl.u32 %v1854, 7
        %v1856 = vsub.s32 %v1597, %v1855
        %v1857 = vrot.slane %v1405, %v1856
        %v1858 = vsel %vm1602, %v1857, %v1853
        %v1859 = vlaneseq
        %v1860 = vshrl.u32 %v1859, 7
        %v1861 = vsub.s32 %v1604, %v1860
        %v1862 = vrot.slane %v1412, %v1861
        %v1863 = vsel %vm1609, %v1862, %v1858
        %v1864 = vlaneseq
        %v1865 = vshrl.u32 %v1864, 7
        %v1866 = vsub.s32 %v1611, %v1865
        %v1867 = vrot.slane %v1419, %v1866
        %v1868 = vsel %vm1616, %v1867, %v1863
        %v1869 = vlaneseq
        %v1870 = vshrl.u32 %v1869, 7
        %v1871 = vsub.s32 %v1618, %v1870
        %v1872 = vrot.slane %v1426, %v1871
        %v1873 = vsel %vm1623, %v1872, %v1868
        %v1874 = vlaneseq
        %v1875 = vshrl.u32 %v1874, 7
        %v1876 = vsub.s32 %v1625, %v1875
        %v1877 = vrot.slane %v1433, %v1876
        %v1878 = vsel %vm1630, %v1877, %v1873
        %v1879 = vlaneseq
        %v1880 = vshrl.u32 %v1879, 7
        %v1881 = vsub.s32 %v1632, %v1880
        %v1882 = vrot.slane %v1440, %v1881
        %v1883 = vsel %vm1637, %v1882, %v1878
        %v1884 = vlaneseq
        %v1885 = vshrl.u32 %v1884, 7
        %v1886 = vsub.s32 %v1639, %v1885
        %v1887 = vrot.slane %v1447, %v1886
        %v1888 = vsel %vm1644, %v1887, %v1883
        %v1889 = vlaneseq
        %v1890 = vshrl.u32 %v1889, 7
        %v1891 = vsub.s32 %v1646, %v1890
        %v1892 = vrot.slane %v1454, %v1891
        %v1893 = vsel %vm1651, %v1892, %v1888
        %v1894 = vlaneseq
        %v1895 = vshrl.u32 %v1894, 7
        %v1896 = vsub.s32 %v1653, %v1895
        %v1897 = vrot.slane %v1461, %v1896
        %v1898 = vsel %vm1658, %v1897, %v1893
        %v1899 = vlaneseq
        %v1900 = vshrl.u32 %v1899, 7
        %v1901 = vsub.s32 %v1660, %v1900
        %v1902 = vrot.slane %v1468, %v1901
        %v1903 = vsel %vm1665, %v1902, %v1898
        %vm1904 = vcmask 1041409
        %v1905 = vsel %vm1904, %v1745, %v1666
        %vm1906 = vcmask 1042434
        %v1907 = vsel %vm1906, %v1824, %v1905
        %vm1908 = vcmask 1043459
        %v1909 = vsel %vm1908, %v1903, %v1907
        %v1911 = vsel %vm1493, %v1909, -1e+10
        %vm1912 = vcmask 1043456
        %v1913 = vsel %vm1912, %v1911, -inf
        %1914 = vmax.xlane.f32.xlu0 %v1913
        %v1915 = vpop.xlane.xlu0 %1914
        %v1916 = vsub.f32 %v1911, %v1915
        %v1917 = vmul.f32 %v1916, 1.442695
        %v1918 = vpow.pop %v1917
        %v1919 = vsel %vm1912, %v1918, 0.0
        %1920 = vadd.xlane.f32.xlu0 %v1919
        %v1921 = vpop.xlane.xlu0 %1920
        %v1922 = vrcp.pop %v1921
        %v1923 = vmul.f32 %v1918, %v1922
        %v1924 = vlaneseq
        %v1925 = vshrl.u32 %v1924, 7
        %v1926 = vsub.s32 0, %v1925
        %v1927 = vrot.slane %v1923, %v1926
        %1929 = vbcast.lane.b32.xlu0 %v1927, 256
        %v1930 = vpop.permute.xlu0 %1929
        %s1932 = sor.u32 256, 8
        %1933 = vbcast.lane.b32.xlu0 %v1927, %s1932
        %v1934 = vpop.permute.xlu0 %1933
        %s1936 = sor.u32 256, 16
        %1937 = vbcast.lane.b32.xlu0 %v1927, %s1936
        %v1938 = vpop.permute.xlu0 %1937
        %s1940 = sor.u32 256, 24
        %1941 = vbcast.lane.b32.xlu0 %v1927, %s1940
        %v1942 = vpop.permute.xlu0 %1941
        %s1944 = sor.u32 256, 32
        %1945 = vbcast.lane.b32.xlu0 %v1927, %s1944
        %v1946 = vpop.permute.xlu0 %1945
        %s1948 = sor.u32 256, 40
        %1949 = vbcast.lane.b32.xlu0 %v1927, %s1948
        %v1950 = vpop.permute.xlu0 %1949
        %s1952 = sor.u32 256, 48
        %1953 = vbcast.lane.b32.xlu0 %v1927, %s1952
        %v1954 = vpop.permute.xlu0 %1953
        %s1956 = sor.u32 256, 56
        %1957 = vbcast.lane.b32.xlu0 %v1927, %s1956
        %v1958 = vpop.permute.xlu0 %1957
        %s1960 = sor.u32 256, 64
        %1961 = vbcast.lane.b32.xlu0 %v1927, %s1960
        %v1962 = vpop.permute.xlu0 %1961
        %s1964 = sor.u32 256, 72
        %1965 = vbcast.lane.b32.xlu0 %v1927, %s1964
        %v1966 = vpop.permute.xlu0 %1965
        %s1968 = sor.u32 256, 80
        %1969 = vbcast.lane.b32.xlu0 %v1927, %s1968
        %v1970 = vpop.permute.xlu0 %1969
        %s1972 = sor.u32 256, 88
        %1973 = vbcast.lane.b32.xlu0 %v1927, %s1972
        %v1974 = vpop.permute.xlu0 %1973
        %s1976 = sor.u32 256, 96
        %1977 = vbcast.lane.b32.xlu0 %v1927, %s1976
        %v1978 = vpop.permute.xlu0 %1977
        %s1980 = sor.u32 256, 104
        %1981 = vbcast.lane.b32.xlu0 %v1927, %s1980
        %v1982 = vpop.permute.xlu0 %1981
        %s1984 = sor.u32 256, 112
        %1985 = vbcast.lane.b32.xlu0 %v1927, %s1984
        %v1986 = vpop.permute.xlu0 %1985
        %s1988 = sor.u32 256, 120
        %1989 = vbcast.lane.b32.xlu0 %v1927, %s1988
        %v1990 = vpop.permute.xlu0 %1989
        %v1991 = vlaneseq
        %v1992 = vshrl.u32 %v1991, 7
        %v1993 = vsub.s32 1, %v1992
        %v1994 = vrot.slane %v1923, %v1993
        %1996 = vbcast.lane.b32.xlu0 %v1994, 256
        %v1997 = vpop.permute.xlu0 %1996
        %s1999 = sor.u32 256, 8
        %2000 = vbcast.lane.b32.xlu0 %v1994, %s1999
        %v2001 = vpop.permute.xlu0 %2000
        %s2003 = sor.u32 256, 16
        %2004 = vbcast.lane.b32.xlu0 %v1994, %s2003
        %v2005 = vpop.permute.xlu0 %2004
        %s2007 = sor.u32 256, 24
        %2008 = vbcast.lane.b32.xlu0 %v1994, %s2007
        %v2009 = vpop.permute.xlu0 %2008
        %s2011 = sor.u32 256, 32
        %2012 = vbcast.lane.b32.xlu0 %v1994, %s2011
        %v2013 = vpop.permute.xlu0 %2012
        %s2015 = sor.u32 256, 40
        %2016 = vbcast.lane.b32.xlu0 %v1994, %s2015
        %v2017 = vpop.permute.xlu0 %2016
        %s2019 = sor.u32 256, 48
        %2020 = vbcast.lane.b32.xlu0 %v1994, %s2019
        %v2021 = vpop.permute.xlu0 %2020
        %s2023 = sor.u32 256, 56
        %2024 = vbcast.lane.b32.xlu0 %v1994, %s2023
        %v2025 = vpop.permute.xlu0 %2024
        %s2027 = sor.u32 256, 64
        %2028 = vbcast.lane.b32.xlu0 %v1994, %s2027
        %v2029 = vpop.permute.xlu0 %2028
        %s2031 = sor.u32 256, 72
        %2032 = vbcast.lane.b32.xlu0 %v1994, %s2031
        %v2033 = vpop.permute.xlu0 %2032
        %s2035 = sor.u32 256, 80
        %2036 = vbcast.lane.b32.xlu0 %v1994, %s2035
        %v2037 = vpop.permute.xlu0 %2036
        %s2039 = sor.u32 256, 88
        %2040 = vbcast.lane.b32.xlu0 %v1994, %s2039
        %v2041 = vpop.permute.xlu0 %2040
        %s2043 = sor.u32 256, 96
        %2044 = vbcast.lane.b32.xlu0 %v1994, %s2043
        %v2045 = vpop.permute.xlu0 %2044
        %s2047 = sor.u32 256, 104
        %2048 = vbcast.lane.b32.xlu0 %v1994, %s2047
        %v2049 = vpop.permute.xlu0 %2048
        %s2051 = sor.u32 256, 112
        %2052 = vbcast.lane.b32.xlu0 %v1994, %s2051
        %v2053 = vpop.permute.xlu0 %2052
        %s2055 = sor.u32 256, 120
        %2056 = vbcast.lane.b32.xlu0 %v1994, %s2055
        %v2057 = vpop.permute.xlu0 %2056
        %v2058 = vlaneseq
        %v2059 = vshrl.u32 %v2058, 7
        %v2060 = vsub.s32 2, %v2059
        %v2061 = vrot.slane %v1923, %v2060
        %2063 = vbcast.lane.b32.xlu0 %v2061, 256
        %v2064 = vpop.permute.xlu0 %2063
        %s2066 = sor.u32 256, 8
        %2067 = vbcast.lane.b32.xlu0 %v2061, %s2066
        %v2068 = vpop.permute.xlu0 %2067
        %s2070 = sor.u32 256, 16
        %2071 = vbcast.lane.b32.xlu0 %v2061, %s2070
        %v2072 = vpop.permute.xlu0 %2071
        %s2074 = sor.u32 256, 24
        %2075 = vbcast.lane.b32.xlu0 %v2061, %s2074
        %v2076 = vpop.permute.xlu0 %2075
        %s2078 = sor.u32 256, 32
        %2079 = vbcast.lane.b32.xlu0 %v2061, %s2078
        %v2080 = vpop.permute.xlu0 %2079
        %s2082 = sor.u32 256, 40
        %2083 = vbcast.lane.b32.xlu0 %v2061, %s2082
        %v2084 = vpop.permute.xlu0 %2083
        %s2086 = sor.u32 256, 48
        %2087 = vbcast.lane.b32.xlu0 %v2061, %s2086
        %v2088 = vpop.permute.xlu0 %2087
        %s2090 = sor.u32 256, 56
        %2091 = vbcast.lane.b32.xlu0 %v2061, %s2090
        %v2092 = vpop.permute.xlu0 %2091
        %s2094 = sor.u32 256, 64
        %2095 = vbcast.lane.b32.xlu0 %v2061, %s2094
        %v2096 = vpop.permute.xlu0 %2095
        %s2098 = sor.u32 256, 72
        %2099 = vbcast.lane.b32.xlu0 %v2061, %s2098
        %v2100 = vpop.permute.xlu0 %2099
        %s2102 = sor.u32 256, 80
        %2103 = vbcast.lane.b32.xlu0 %v2061, %s2102
        %v2104 = vpop.permute.xlu0 %2103
        %s2106 = sor.u32 256, 88
        %2107 = vbcast.lane.b32.xlu0 %v2061, %s2106
        %v2108 = vpop.permute.xlu0 %2107
        %s2110 = sor.u32 256, 96
        %2111 = vbcast.lane.b32.xlu0 %v2061, %s2110
        %v2112 = vpop.permute.xlu0 %2111
        %s2114 = sor.u32 256, 104
        %2115 = vbcast.lane.b32.xlu0 %v2061, %s2114
        %v2116 = vpop.permute.xlu0 %2115
        %s2118 = sor.u32 256, 112
        %2119 = vbcast.lane.b32.xlu0 %v2061, %s2118
        %v2120 = vpop.permute.xlu0 %2119
        %s2122 = sor.u32 256, 120
        %2123 = vbcast.lane.b32.xlu0 %v2061, %s2122
        %v2124 = vpop.permute.xlu0 %2123
        %v2125 = vlaneseq
        %v2126 = vshrl.u32 %v2125, 7
        %v2127 = vsub.s32 3, %v2126
        %v2128 = vrot.slane %v1923, %v2127
        %2130 = vbcast.lane.b32.xlu0 %v2128, 256
        %v2131 = vpop.permute.xlu0 %2130
        %s2133 = sor.u32 256, 8
        %2134 = vbcast.lane.b32.xlu0 %v2128, %s2133
        %v2135 = vpop.permute.xlu0 %2134
        %s2137 = sor.u32 256, 16
        %2138 = vbcast.lane.b32.xlu0 %v2128, %s2137
        %v2139 = vpop.permute.xlu0 %2138
        %s2141 = sor.u32 256, 24
        %2142 = vbcast.lane.b32.xlu0 %v2128, %s2141
        %v2143 = vpop.permute.xlu0 %2142
        %s2145 = sor.u32 256, 32
        %2146 = vbcast.lane.b32.xlu0 %v2128, %s2145
        %v2147 = vpop.permute.xlu0 %2146
        %s2149 = sor.u32 256, 40
        %2150 = vbcast.lane.b32.xlu0 %v2128, %s2149
        %v2151 = vpop.permute.xlu0 %2150
        %s2153 = sor.u32 256, 48
        %2154 = vbcast.lane.b32.xlu0 %v2128, %s2153
        %v2155 = vpop.permute.xlu0 %2154
        %s2157 = sor.u32 256, 56
        %2158 = vbcast.lane.b32.xlu0 %v2128, %s2157
        %v2159 = vpop.permute.xlu0 %2158
        %s2161 = sor.u32 256, 64
        %2162 = vbcast.lane.b32.xlu0 %v2128, %s2161
        %v2163 = vpop.permute.xlu0 %2162
        %s2165 = sor.u32 256, 72
        %2166 = vbcast.lane.b32.xlu0 %v2128, %s2165
        %v2167 = vpop.permute.xlu0 %2166
        %s2169 = sor.u32 256, 80
        %2170 = vbcast.lane.b32.xlu0 %v2128, %s2169
        %v2171 = vpop.permute.xlu0 %2170
        %s2173 = sor.u32 256, 88
        %2174 = vbcast.lane.b32.xlu0 %v2128, %s2173
        %v2175 = vpop.permute.xlu0 %2174
        %s2177 = sor.u32 256, 96
        %2178 = vbcast.lane.b32.xlu0 %v2128, %s2177
        %v2179 = vpop.permute.xlu0 %2178
        %s2181 = sor.u32 256, 104
        %2182 = vbcast.lane.b32.xlu0 %v2128, %s2181
        %v2183 = vpop.permute.xlu0 %2182
        %s2185 = sor.u32 256, 112
        %2186 = vbcast.lane.b32.xlu0 %v2128, %s2185
        %v2187 = vpop.permute.xlu0 %2186
        %s2189 = sor.u32 256, 120
        %2190 = vbcast.lane.b32.xlu0 %v2128, %s2189
        %v2191 = vpop.permute.xlu0 %2190
        %v2192 = vmul.f32 %v575, %v1930
        %v2193 = vmul.f32 %v578, %v1934
        %v2194 = vmul.f32 %v583, %v1938
        %v2195 = vmul.f32 %v586, %v1942
        %v2196 = vmul.f32 %v591, %v1946
        %v2197 = vmul.f32 %v594, %v1950
        %v2198 = vmul.f32 %v599, %v1954
        %v2199 = vmul.f32 %v602, %v1958
        %v2200 = vmul.f32 %v607, %v1962
        %v2201 = vmul.f32 %v610, %v1966
        %v2202 = vmul.f32 %v615, %v1970
        %v2203 = vmul.f32 %v618, %v1974
        %v2204 = vmul.f32 %v623, %v1978
        %v2205 = vmul.f32 %v626, %v1982
        %v2206 = vmul.f32 %v631, %v1986
        %v2207 = vmul.f32 %v634, %v1990
        %v2208 = vmul.f32 %v639, %v1997
        %v2209 = vmul.f32 %v642, %v2001
        %v2210 = vmul.f32 %v647, %v2005
        %v2211 = vmul.f32 %v650, %v2009
        %v2212 = vmul.f32 %v655, %v2013
        %v2213 = vmul.f32 %v658, %v2017
        %v2214 = vmul.f32 %v663, %v2021
        %v2215 = vmul.f32 %v666, %v2025
        %v2216 = vmul.f32 %v671, %v2029
        %v2217 = vmul.f32 %v674, %v2033
        %v2218 = vmul.f32 %v679, %v2037
        %v2219 = vmul.f32 %v682, %v2041
        %v2220 = vmul.f32 %v687, %v2045
        %v2221 = vmul.f32 %v690, %v2049
        %v2222 = vmul.f32 %v695, %v2053
        %v2223 = vmul.f32 %v698, %v2057
        %v2224 = vmul.f32 %v703, %v2064
        %v2225 = vmul.f32 %v706, %v2068
        %v2226 = vmul.f32 %v711, %v2072
        %v2227 = vmul.f32 %v714, %v2076
        %v2228 = vmul.f32 %v719, %v2080
        %v2229 = vmul.f32 %v722, %v2084
        %v2230 = vmul.f32 %v727, %v2088
        %v2231 = vmul.f32 %v730, %v2092
        %v2232 = vmul.f32 %v735, %v2096
        %v2233 = vmul.f32 %v738, %v2100
        %v2234 = vmul.f32 %v743, %v2104
        %v2235 = vmul.f32 %v746, %v2108
        %v2236 = vmul.f32 %v751, %v2112
        %v2237 = vmul.f32 %v754, %v2116
        %v2238 = vmul.f32 %v759, %v2120
        %v2239 = vmul.f32 %v762, %v2124
        %v2240 = vmul.f32 %v767, %v2131
        %v2241 = vmul.f32 %v770, %v2135
        %v2242 = vmul.f32 %v775, %v2139
        %v2243 = vmul.f32 %v778, %v2143
        %v2244 = vmul.f32 %v783, %v2147
        %v2245 = vmul.f32 %v786, %v2151
        %v2246 = vmul.f32 %v791, %v2155
        %v2247 = vmul.f32 %v794, %v2159
        %v2248 = vmul.f32 %v799, %v2163
        %v2249 = vmul.f32 %v802, %v2167
        %v2250 = vmul.f32 %v807, %v2171
        %v2251 = vmul.f32 %v810, %v2175
        %v2252 = vmul.f32 %v815, %v2179
        %v2253 = vmul.f32 %v818, %v2183
        %v2254 = vmul.f32 %v823, %v2187
        %v2255 = vmul.f32 %v826, %v2191
        %2256 = vst [vmem:[%s209] sm:$0xff] %v2192
        %2257 = vst [vmem:[%s209 + $0x8] sm:$0xff] %v2193
        %2258 = vst [vmem:[%s209 + $0x10] sm:$0xff] %v2194
        %2259 = vst [vmem:[%s209 + $0x18] sm:$0xff] %v2195
        %2260 = vst [vmem:[%s209 + $0x20] sm:$0xff] %v2196
        %2261 = vst [vmem:[%s209 + $0x28] sm:$0xff] %v2197
        %2262 = vst [vmem:[%s209 + $0x30] sm:$0xff] %v2198
        %2263 = vst [vmem:[%s209 + $0x38] sm:$0xff] %v2199
        %2264 = vst [vmem:[%s209 + $0x40] sm:$0xff] %v2200
        %2265 = vst [vmem:[%s209 + $0x48] sm:$0xff] %v2201
        %2266 = vst [vmem:[%s209 + $0x50] sm:$0xff] %v2202
        %2267 = vst [vmem:[%s209 + $0x58] sm:$0xff] %v2203
        %2268 = vst [vmem:[%s209 + $0x60] sm:$0xff] %v2204
        %2269 = vst [vmem:[%s209 + $0x68] sm:$0xff] %v2205
        %2270 = vst [vmem:[%s209 + $0x70] sm:$0xff] %v2206
        %2271 = vst [vmem:[%s209 + $0x78] sm:$0xff] %v2207
        %2272 = vst [vmem:[%s209 + $0x80] sm:$0xff] %v2208
        %2273 = vst [vmem:[%s209 + $0x88] sm:$0xff] %v2209
        %2274 = vst [vmem:[%s209 + $0x90] sm:$0xff] %v2210
        %2275 = vst [vmem:[%s209 + $0x98] sm:$0xff] %v2211
        %2276 = vst [vmem:[%s209 + $0xa0] sm:$0xff] %v2212
        %2277 = vst [vmem:[%s209 + $0xa8] sm:$0xff] %v2213
        %2278 = vst [vmem:[%s209 + $0xb0] sm:$0xff] %v2214
        %2279 = vst [vmem:[%s209 + $0xb8] sm:$0xff] %v2215
        %2280 = vst [vmem:[%s209 + $0xc0] sm:$0xff] %v2216
        %2281 = vst [vmem:[%s209 + $0xc8] sm:$0xff] %v2217
        %2282 = vst [vmem:[%s209 + $0xd0] sm:$0xff] %v2218
        %2283 = vst [vmem:[%s209 + $0xd8] sm:$0xff] %v2219
        %2284 = vst [vmem:[%s209 + $0xe0] sm:$0xff] %v2220
        %2285 = vst [vmem:[%s209 + $0xe8] sm:$0xff] %v2221
        %2286 = vst [vmem:[%s209 + $0xf0] sm:$0xff] %v2222
        %2287 = vst [vmem:[%s209 + $0xf8] sm:$0xff] %v2223
        %2288 = vst [vmem:[%s209 + $0x100] sm:$0xff] %v2224
        %2289 = vst [vmem:[%s209 + $0x108] sm:$0xff] %v2225
        %2290 = vst [vmem:[%s209 + $0x110] sm:$0xff] %v2226
        %2291 = vst [vmem:[%s209 + $0x118] sm:$0xff] %v2227
        %2292 = vst [vmem:[%s209 + $0x120] sm:$0xff] %v2228
        %2293 = vst [vmem:[%s209 + $0x128] sm:$0xff] %v2229
        %2294 = vst [vmem:[%s209 + $0x130] sm:$0xff] %v2230
        %2295 = vst [vmem:[%s209 + $0x138] sm:$0xff] %v2231
        %2296 = vst [vmem:[%s209 + $0x140] sm:$0xff] %v2232
        %2297 = vst [vmem:[%s209 + $0x148] sm:$0xff] %v2233
        %2298 = vst [vmem:[%s209 + $0x150] sm:$0xff] %v2234
        %2299 = vst [vmem:[%s209 + $0x158] sm:$0xff] %v2235
        %2300 = vst [vmem:[%s209 + $0x160] sm:$0xff] %v2236
        %2301 = vst [vmem:[%s209 + $0x168] sm:$0xff] %v2237
        %2302 = vst [vmem:[%s209 + $0x170] sm:$0xff] %v2238
        %2303 = vst [vmem:[%s209 + $0x178] sm:$0xff] %v2239
        %2304 = vst [vmem:[%s209 + $0x180] sm:$0xff] %v2240
        %2305 = vst [vmem:[%s209 + $0x188] sm:$0xff] %v2241
        %2306 = vst [vmem:[%s209 + $0x190] sm:$0xff] %v2242
        %2307 = vst [vmem:[%s209 + $0x198] sm:$0xff] %v2243
        %2308 = vst [vmem:[%s209 + $0x1a0] sm:$0xff] %v2244
        %2309 = vst [vmem:[%s209 + $0x1a8] sm:$0xff] %v2245
        %2310 = vst [vmem:[%s209 + $0x1b0] sm:$0xff] %v2246
        %2311 = vst [vmem:[%s209 + $0x1b8] sm:$0xff] %v2247
        %2312 = vst [vmem:[%s209 + $0x1c0] sm:$0xff] %v2248
        %2313 = vst [vmem:[%s209 + $0x1c8] sm:$0xff] %v2249
        %2314 = vst [vmem:[%s209 + $0x1d0] sm:$0xff] %v2250
        %2315 = vst [vmem:[%s209 + $0x1d8] sm:$0xff] %v2251
        %2316 = vst [vmem:[%s209 + $0x1e0] sm:$0xff] %v2252
        %2317 = vst [vmem:[%s209 + $0x1e8] sm:$0xff] %v2253
        %2318 = vst [vmem:[%s209 + $0x1f0] sm:$0xff] %v2254
        %2319 = vst [vmem:[%s209 + $0x1f8] sm:$0xff] %v2255
        %s2320 = sand.u32 %s102, 1
        %s2321 = scalar_lea.sflag [#allocation6], %s2320
        %s2322 = sand.u32 %s102, 1
        %s2323 = smul.addr %s2322, 512
        %s2324 = scalar_lea.vmem [#allocation9], %s2323
        // Predicated region
        $region41: #{tpu_custom_call.1} parent=31 // pred_check
          %p2325 = pneg %p112
        $region42: #{tpu_custom_call.1} parent=31 // pred_check_branch
          %2327 = sbr.rel (%p2325) target = $region44
        $region43: #{tpu_custom_call.1} parent=31 // pred_region
          %s2328 = smul.u32 4, %s26
          %s2330 = ssub.s32 8192, 8192
          %2331 = vsyncadd %s2321, %s2330
          %s2332 = smul.addr %s2328, 16
          %s2333 = smul.addr %s2332, 128
          %s2334 = scalar_lea.hbm %s4, %s2333
          %s2335 = sshll.u32 %s2324, 4
          %s2336 = int_to_ptr.vmem [resolvable:$true] %s2335
          %2341 = dma.vmem_to_hbm [thread:$0]  %s2336, 8192, %s2334, %s2321, 128, 128, 8
        $region44: #{tpu_custom_call.1} parent=31 // pred_fallthru
          _
      $region32: #{tpu_custom_call.1} parent=5 // pred_fallthru
        _
      %p2342 = scmp.le.s32.totalorder 2, %s21
      // Predicated region
      $region45: #{tpu_custom_call.1} parent=5 // pred_check
        %p2343 = pneg %p2342
      $region46: #{tpu_custom_call.1} parent=5 // pred_check_branch
        %2345 = sbr.rel (%p2343) target = $region48
      $region47: #{tpu_custom_call.1} parent=5 // pred_region
        %s2346 = ssub.s32 %s21, 2
        // Predicated region
        $region49: #{tpu_custom_call.1} parent=47 // pred_check
          %p2347 = pneg %p118
        $region50: #{tpu_custom_call.1} parent=47 // pred_check_branch
          %2349 = sbr.rel (%p2347) target = $region52
        $region51: #{tpu_custom_call.1} parent=47 // pred_region
          %s2350 = sand.u32 %s103, 1
          %s2351 = scalar_lea.sflag [#allocation6], %s2350
          %s2352 = sand.u32 %s103, 1
          %s2353 = smul.addr %s2352, 512
          %s2354 = scalar_lea.vmem [#allocation9], %s2353
          %2355 = dma.done %s2351, 8192
        $region52: #{tpu_custom_call.1} parent=47 // pred_fallthru
          _
      $region48: #{tpu_custom_call.1} parent=5 // pred_fallthru
        _
    $region6: #{tpu_custom_call.1} parent=1 // loop_footer
      %s25 = sadd.s32 1, %s21
    $region7: #{tpu_custom_call.1} parent=1 // loop_footer_branch
      %20 = sbr.rel target = $region3
    $region8: #{tpu_custom_call.1} parent=1 // loop_exit
      _
    %2356 = vsyncpa [#allocation5], 1
    %s2357 = scalar_lea.sflag [#allocation5], 1
    %2358 = vsyncpa %s2357, 1
    %2359 = vsyncpa [#allocation8], 1
    %2360 = vsyncpa [#allocation6], 1
    %s2361 = scalar_lea.sflag [#allocation6], 1
    %2362 = vsyncpa %s2361, 1

</llo_original>
